<compile_context>
chip_gen: v6e
topology: v6e:2x2x1
jax: 0.10.0
libtpu: 0.0.40
codegen_flags: <defaults>
</compile_context>

<pallas_src>
import jax
import jax.numpy as jnp
from jax import lax
from jax.experimental import pallas as pl
from jax.experimental.pallas import tpu as pltpu

NEG_SLOPE = 0.01            # nn.LeakyReLU default
BN_EPS = 1e-5               # nn.BatchNorm2d default
# Set to jnp.bfloat16 on v6e/v7x to halve HBM traffic (MXU operands only;
# accumulation + BN/LeakyReLU epilogue stay f32).  f32 default keeps the
# self-check tight and avoids bf16 VPU converts on v5e.
ACT_DTYPE = jnp.float32
_VMEM_LIMIT = 32 * 1024 * 1024   # modest; v7x has only 64 MiB physical VMEM


# --------------------------- ConvTranspose2d (2x2, s2) --------------------------- #

def _upconv_kernel(x_ref, u_ref, b_ref, o_ref):
    """ConvTranspose2d(k=2, s=2) for one image, fully lane-dense.

    x_ref: (1, H, W*Cin)        input rows, channels folded into lanes
    u_ref: (W*Cin, 4*W*Cout)    block-diag weight; column = a*2WC + (2j+b)*Cout + c
    b_ref: (1, 4*W*Cout)        bias broadcast over (a, j, b)
    o_ref: (1, H, 4*W*Cout)     row i holds output rows 2i | 2i+1 back-to-back
    """
    y = jnp.dot(x_ref[0], u_ref[...], preferred_element_type=jnp.float32)
    y = y + b_ref[...]
    o_ref[0] = y.astype(o_ref.dtype)


def conv_transpose_2x2(x_nhwc, w_pt, b):
    """x_nhwc: (N,H,W,Cin).  w_pt: PyTorch layout (Cin, Cout, 2, 2).  b: (Cout,).
    Returns (N, 2H, 2W, Cout) NHWC; the pixel shuffle is a zero-copy reshape."""
    N, H, W, Cin = x_nhwc.shape
    Cout = w_pt.shape[1]

    # Block-diagonal weight: U[j*Cin+ci, a*2WC + (2j+b)*Cout + c] = w[ci, c, a, b]
    eye = jnp.eye(W, dtype=jnp.float32)
    u_cols = []
    for a in range(2):
        u_a = jnp.transpose(w_pt[:, :, a, :], (0, 2, 1)).reshape(Cin, 2 * Cout)
        u_cols.append(jnp.kron(eye, u_a))                   # (W*Cin, 2*W*Cout)
    u = jnp.concatenate(u_cols, axis=1).astype(ACT_DTYPE)   # (W*Cin, 4*W*Cout)
    b4 = jnp.tile(b, 4 * W).reshape(1, 4 * W * Cout).astype(jnp.float32)

    x_flat = x_nhwc.astype(ACT_DTYPE).reshape(N, H, W * Cin)    # zero-copy

    itemsize = jnp.dtype(ACT_DTYPE).itemsize
    flops = int(2 * N * H * (W * Cin) * (4 * W * Cout))
    bytes_accessed = int((x_flat.size + u.size + b4.size
                          + N * H * 4 * W * Cout) * itemsize)

    out = pl.pallas_call(
        _upconv_kernel,
        out_shape=jax.ShapeDtypeStruct((N, H, 4 * W * Cout), ACT_DTYPE),
        grid_spec=pltpu.PrefetchScalarGridSpec(
            num_scalar_prefetch=0,
            grid=(N,),
            in_specs=[
                pl.BlockSpec((1, H, W * Cin), lambda n: (n, 0, 0)),
                pl.BlockSpec((W * Cin, 4 * W * Cout), lambda n: (0, 0)),
                pl.BlockSpec((1, 4 * W * Cout), lambda n: (0, 0)),
            ],
            out_specs=pl.BlockSpec((1, H, 4 * W * Cout), lambda n: (n, 0, 0)),
        ),
        compiler_params=pltpu.CompilerParams(
            dimension_semantics=("parallel",),          # v7x: both TCs if N >= 2
            vmem_limit_bytes=_VMEM_LIMIT),
        cost_estimate=pl.CostEstimate(flops=flops, transcendentals=0,
                                      bytes_accessed=bytes_accessed),
    )(x_flat, u, b4)

    # (N, H, 4*W*Cout) -> (N, 2H, 2W, Cout): pure row-major regrouping (zero-copy).
    return out.reshape(N, 2 * H, 2 * W, Cout)


# -------------------- fused Conv3x3 + BN(eval) + LeakyReLU -------------------- #

def _band_weights(w_part, W):
    """w_part: (Cout, Cin, 3, 3) -> (3, (W+2)*Cin, W*Cout) banded matrices so that
    conv_out[y, x*Cout+co] = sum_dy padded_row[y+dy, :] @ band[dy]."""
    Wp = W + 2
    rows = jnp.arange(W)
    bands = []
    for dy in range(3):
        acc = None
        for dx in range(3):
            ind = jnp.zeros((Wp, W), jnp.float32).at[rows + dx, rows].set(1.0)
            blk = jnp.kron(ind, w_part[:, :, dy, dx].T)      # ((W+2)*Cin, W*Cout)
            acc = blk if acc is None else acc + blk
        bands.append(acc)
    return jnp.stack(bands)


def _make_conv_bn_lrelu_kernel(num_inputs, interiors):
    """Conv2d(3x3, pad=1) + folded-BN affine + LeakyReLU; one image per grid step.

    Each input i arrives unpadded & lane-dense as (1, h_i, w_i*Cin_i).  It is
    written into a zeroed VMEM scratch of shape (H+2, (W+2)*Cin_i) at the static
    offset interiors[i] (this fuses the F.pad alignment with the conv halo pad),
    then 3 row-matmuls (one per dy tap) run against banded weights with
    K = (W+2)*Cin_i.  Per-input partials are summed (split-K == torch.cat(dim=1))."""

    def kernel(*args):
        x_refs = args[:num_inputs]
        w_refs = args[num_inputs:2 * num_inputs]
        scale_ref = args[2 * num_inputs]
        shift_ref = args[2 * num_inputs + 1]
        o_ref = args[2 * num_inputs + 2]
        pad_refs = args[2 * num_inputs + 3:]

        _, H, WC = o_ref.shape                        # (1, H, W*Cout)
        acc = jnp.zeros((H, WC), jnp.float32)
        for i in range(num_inputs):
            r0, nr, c0, nc = interiors[i]
            # zero border every step (megacore-safe), then place the interior.
            pad_refs[i][...] = jnp.zeros(pad_refs[i].shape, pad_refs[i].dtype)
            pad_refs[i][r0:r0 + nr, c0:c0 + nc] = \
                x_refs[i][0].astype(pad_refs[i].dtype)
            for dy in range(3):                       # 3 taps -> 3 row-matmuls
                acc += jnp.dot(pad_refs[i][dy:dy + H, :], w_refs[i][dy],
                               preferred_element_type=jnp.float32)
        y = acc * scale_ref[...] + shift_ref[...]     # conv bias + BN folded affine
        y = jnp.where(y >= 0.0, y, NEG_SLOPE * y)     # LeakyReLU (f32 epilogue)
        o_ref[0] = y.astype(o_ref.dtype)

    return kernel


def conv3x3_bn_lrelu(inputs, w_pt, b, gamma, beta, mean, var, out_hw):
    """inputs: list of (x_nhwc, (pad_top, pad_bot, pad_left, pad_right)) which,
    once aligned by their pads, all have spatial size out_hw and together form
    the conv input along channels (== torch.cat(..., dim=1)).
    w_pt: Conv2d weight (Cout, sum(Cin_i), 3, 3).  Returns (N, H, W, Cout) NHWC."""
    H, W = out_hw
    N = inputs[0][0].shape[0]
    Cout = w_pt.shape[0]

    x_flat, band_w, interiors, in_specs, scratch = [], [], [], [], []
    coff = 0
    for x, (ptop, pbot, pleft, pright) in inputs:
        n_, h_, w_, cin = x.shape
        assert n_ == N and h_ + ptop + pbot == H and w_ + pleft + pright == W
        assert min(ptop, pbot, pleft, pright) >= 0  # TODO(synk): negative pad (crop)
        band_w.append(_band_weights(w_pt[:, coff:coff + cin], W).astype(ACT_DTYPE))
        coff += cin
        x_flat.append(x.astype(ACT_DTYPE).reshape(N, h_, w_ * cin))   # zero-copy
        interiors.append((1 + ptop, h_, (1 + pleft) * cin, w_ * cin))
        in_specs.append(pl.BlockSpec((1, h_, w_ * cin), lambda n: (n, 0, 0)))
        scratch.append(pltpu.VMEM((H + 2, (W + 2) * cin), ACT_DTYPE))
    assert coff == w_pt.shape[1]

    inv_std = 1.0 / jnp.sqrt(var + BN_EPS)
    scale_c = gamma * inv_std
    shift_c = beta + (b - mean) * scale_c
    scale = jnp.tile(scale_c, W).reshape(1, W * Cout).astype(jnp.float32)
    shift = jnp.tile(shift_c, W).reshape(1, W * Cout).astype(jnp.float32)

    for bw in band_w:
        in_specs.append(pl.BlockSpec(bw.shape, lambda n: (0, 0, 0)))
    in_specs.append(pl.BlockSpec((1, W * Cout), lambda n: (0, 0)))
    in_specs.append(pl.BlockSpec((1, W * Cout), lambda n: (0, 0)))

    kernel = _make_conv_bn_lrelu_kernel(len(inputs), tuple(interiors))

    itemsize = jnp.dtype(ACT_DTYPE).itemsize
    flops = int(sum(2 * N * H * bw.shape[1] * bw.shape[2] * 3 for bw in band_w))
    bytes_accessed = int((sum(x.size for x in x_flat)
                          + sum(bw.size for bw in band_w)
                          + N * H * W * Cout) * itemsize)

    out = pl.pallas_call(
        kernel,
        out_shape=jax.ShapeDtypeStruct((N, H, W * Cout), ACT_DTYPE),
        grid_spec=pltpu.PrefetchScalarGridSpec(
            num_scalar_prefetch=0,
            grid=(N,),
            in_specs=in_specs,
            out_specs=pl.BlockSpec((1, H, W * Cout), lambda n: (n, 0, 0)),
            scratch_shapes=scratch),
        compiler_params=pltpu.CompilerParams(
            dimension_semantics=("parallel",),          # v7x: both TCs if N >= 2
            vmem_limit_bytes=_VMEM_LIMIT),
        cost_estimate=pl.CostEstimate(flops=flops, transcendentals=0,
                                      bytes_accessed=bytes_accessed),
    )(*x_flat, *band_w, scale, shift)

    return out.reshape(N, H, W, Cout)   # zero-copy split of the lane axis


# --------------------------------- forward pass --------------------------------- #

def conv_decoder_forward_nhwc(p, x, skip):
    """ConvDecoder.forward(x, skip) with NHWC activations (no transpose passes)."""
    up = conv_transpose_2x2(x.astype(ACT_DTYPE), p["up_w"], p["up_b"])
    SH, SW = skip.shape[1], skip.shape[2]
    dy = SH - up.shape[1]
    dx = SW - up.shape[2]

    h = conv3x3_bn_lrelu(
        [(up, (dy // 2, dy - dy // 2, dx // 2, dx - dx // 2)),   # cat channels 0..Cup
         (skip.astype(ACT_DTYPE), (0, 0, 0, 0))],                # cat channels Cup..
        p["c1_w"], p["c1_b"], p["bn1_g"], p["bn1_b"], p["bn1_m"], p["bn1_v"],
        (SH, SW))
    h = conv3x3_bn_lrelu(
        [(h, (0, 0, 0, 0))],
        p["c2_w"], p["c2_b"], p["bn2_g"], p["bn2_b"], p["bn2_m"], p["bn2_v"],
        (SH, SW))
    return h


def conv_decoder_forward(p, x_nchw, skip_nchw):
    """PyTorch-interface wrapper (NCHW in / NCHW out)."""
    x = jnp.transpose(x_nchw, (0, 2, 3, 1))
    skip = jnp.transpose(skip_nchw, (0, 2, 3, 1))
    h = conv_decoder_forward_nhwc(p, x, skip)
    return jnp.transpose(h, (0, 3, 1, 2)).astype(x_nchw.dtype)


# ----------------------------- reference & params ------------------------------ #

def reference_forward(p, x, skip):
    """Pure-JAX (XLA) reference for the same forward pass, NCHW in/out."""
    N, _, H, W = x.shape
    Cout = p["up_w"].shape[1]
    up = jnp.einsum("nchw,cdab->ndhawb", x, p["up_w"],
                    precision=lax.Precision.HIGHEST).reshape(N, Cout, 2 * H, 2 * W)
    up = up + p["up_b"][None, :, None, None]
    dy = skip.shape[2] - up.shape[2]
    dx = skip.shape[3] - up.shape[3]
    up = jnp.pad(up, ((0, 0), (0, 0),
                      (dy // 2, dy - dy // 2), (dx // 2, dx - dx // 2)))
    h = jnp.concatenate([up, skip], axis=1)

    def block(h, w, b, g, bt, m, v):
        h = lax.conv_general_dilated(h, w, (1, 1), ((1, 1), (1, 1)),
                                     dimension_numbers=("NCHW", "OIHW", "NCHW"),
                                     precision=lax.Precision.HIGHEST)
        s = g / jnp.sqrt(v + BN_EPS)
        h = h * s[None, :, None, None] + (bt + (b - m) * s)[None, :, None, None]
        return jnp.where(h >= 0, h, NEG_SLOPE * h)

    h = block(h, p["c1_w"], p["c1_b"], p["bn1_g"], p["bn1_b"], p["bn1_m"], p["bn1_v"])
    h = block(h, p["c2_w"], p["c2_b"], p["bn2_g"], p["bn2_b"], p["bn2_m"], p["bn2_v"])
    return h


def init_params(key, in_channels, out_channels):
    ks = jax.random.split(key, 14)
    f32 = jnp.float32
    return {
        # ConvTranspose2d: weight (Cin, Cout, 2, 2), bias (Cout,)
        "up_w": 0.1 * jax.random.normal(ks[0], (in_channels, out_channels, 2, 2), f32),
        "up_b": 0.1 * jax.random.normal(ks[1], (out_channels,), f32),
        # ConvBlock conv1: in_channels -> out_channels
        "c1_w": 0.1 * jax.random.normal(ks[2], (out_channels, in_channels, 3, 3), f32),
        "c1_b": 0.1 * jax.random.normal(ks[3], (out_channels,), f32),
        "bn1_g": 1.0 + 0.1 * jax.random.normal(ks[4], (out_channels,), f32),
        "bn1_b": 0.1 * jax.random.normal(ks[5], (out_channels,), f32),
        "bn1_m": 0.1 * jax.random.normal(ks[6], (out_channels,), f32),
        "bn1_v": 1.0 + 0.1 * jnp.abs(jax.random.normal(ks[7], (out_channels,), f32)),
        # ConvBlock conv2: out_channels -> out_channels
        "c2_w": 0.1 * jax.random.normal(ks[8], (out_channels, out_channels, 3, 3), f32),
        "c2_b": 0.1 * jax.random.normal(ks[9], (out_channels,), f32),
        "bn2_g": 1.0 + 0.1 * jax.random.normal(ks[10], (out_channels,), f32),
        "bn2_b": 0.1 * jax.random.normal(ks[11], (out_channels,), f32),
        "bn2_m": 0.1 * jax.random.normal(ks[12], (out_channels,), f32),
        "bn2_v": 1.0 + 0.1 * jnp.abs(jax.random.normal(ks[13], (out_channels,), f32)),
    }


if __name__ == "__main__":
    key = jax.random.PRNGKey(0)
    in_channels, out_channels = 8, 4
    N, H, W = 2, 8, 8            # x spatial -> upsampled to 16x16
    SH, SW = 17, 24              # skip larger -> exercises the F.pad alignment path

    k_x, k_s, k_p = jax.random.split(key, 3)
    x = jax.random.normal(k_x, (N, in_channels, H, W), jnp.float32)          # NCHW
    skip = jax.random.normal(k_s, (N, in_channels - out_channels, SH, SW),
                             jnp.float32)                                    # NCHW
    params = init_params(k_p, in_channels, out_channels)

    fwd = jax.jit(conv_decoder_forward)
    out = jax.block_until_ready(fwd(params, x, skip))

    assert out.shape == (N, out_channels, SH, SW), out.shape
    assert bool(jnp.all(jnp.isfinite(out)))

    ref = reference_forward(params, x, skip)
    err = float(jnp.max(jnp.abs(out - ref)))
    assert err < 3e-2, f"max abs error vs reference: {err}"
    print("KERNEL_OK")
</pallas_src>

<mosaic_0001>
module attributes {stable_mosaic.version = 11 : i64} {
  func.func @_upconv_kernel(%arg0: i32, %arg1: memref<1x8x64xf32, #tpu.memory_space<vmem>>, %arg2: memref<64x128xf32, #tpu.memory_space<vmem>>, %arg3: memref<1x128xf32, #tpu.memory_space<vmem>>, %arg4: memref<1x8x128xf32, #tpu.memory_space<vmem>>) attributes {dimension_semantics = [#tpu.dimension_semantics<parallel>], iteration_bounds = array<i64: 2>, scalar_prefetch = 0 : i64, scratch_operands = 0 : i64, tpu.core_type = #tpu.core_type<tc>, window_params = [{transform_indices = @transform_0, window_bounds = array<i64: 1, 8, 64>}, {pipeline_mode = #tpu.pipeline_mode<synchronous>, transform_indices = @transform_1, window_bounds = array<i64: 64, 128>}, {pipeline_mode = #tpu.pipeline_mode<synchronous>, transform_indices = @transform_2, window_bounds = array<i64: 1, 128>}, {transform_indices = @transform_3, window_bounds = array<i64: 1, 8, 128>}]} {
    %c0 = arith.constant 0 : index
    %c0_0 = arith.constant 0 : index
    %c0_1 = arith.constant 0 : index
    %0 = vector.load %arg1[%c0, %c0_0, %c0_1] : memref<1x8x64xf32, #tpu.memory_space<vmem>>, vector<1x8x64xf32>
    %1 = vector.shape_cast %0 : vector<1x8x64xf32> to vector<8x64xf32>
    %c0_2 = arith.constant 0 : index
    %c0_3 = arith.constant 0 : index
    %2 = vector.load %arg2[%c0_2, %c0_3] : memref<64x128xf32, #tpu.memory_space<vmem>>, vector<64x128xf32>
    %cst = arith.constant dense<0.000000e+00> : vector<8x128xf32>
    %3 = tpu.matmul %1, %2, %cst {dimension_numbers = #tpu.dot_dimension_numbers<[1], [0], [0], [1], [0, 0, 1, 1], [], []>} : vector<8x64xf32>, vector<64x128xf32>, vector<8x128xf32> -> vector<8x128xf32>
    %c0_4 = arith.constant 0 : index
    %c0_5 = arith.constant 0 : index
    %4 = vector.load %arg3[%c0_4, %c0_5] : memref<1x128xf32, #tpu.memory_space<vmem>>, vector<1x128xf32>
    %5 = vector.broadcast %4 : vector<1x128xf32> to vector<8x128xf32>
    %6 = arith.addf %3, %5 : vector<8x128xf32>
    %c0_6 = arith.constant 0 : index
    %c0_7 = arith.constant 0 : index
    %c0_8 = arith.constant 0 : index
    %7 = vector.load %arg4[%c0_6, %c0_7, %c0_8] : memref<1x8x128xf32, #tpu.memory_space<vmem>>, vector<1x8x128xf32>
    %8 = vector.shape_cast %7 : vector<1x8x128xf32> to vector<8x128xf32>
    %9 = vector.shape_cast %6 : vector<8x128xf32> to vector<1x8x128xf32>
    tpu.vector_store %arg4[%c0_6, %c0_7, %c0_8], %9 {strides = array<i32>} : memref<1x8x128xf32, #tpu.memory_space<vmem>>, vector<1x8x128xf32>,
    return
  }
  func.func @transform_0(%arg0: i32) -> (i32, i32, i32) {
    %c0_i32 = arith.constant 0 : i32
    %c0_i32_0 = arith.constant 0 : i32
    %c0_i32_1 = arith.constant 0 : i32
    return %arg0, %c0_i32, %c0_i32_0 : i32, i32, i32
  }
  func.func @transform_1(%arg0: i32) -> (i32, i32) {
    %c0_i32 = arith.constant 0 : i32
    %c0_i32_0 = arith.constant 0 : i32
    %c0_i32_1 = arith.constant 0 : i32
    return %c0_i32, %c0_i32_0 : i32, i32
  }
  func.func @transform_2(%arg0: i32) -> (i32, i32) {
    %c0_i32 = arith.constant 0 : i32
    %c0_i32_0 = arith.constant 0 : i32
    %c0_i32_1 = arith.constant 0 : i32
    return %c0_i32, %c0_i32_0 : i32, i32
  }
  func.func @transform_3(%arg0: i32) -> (i32, i32, i32) {
    %c0_i32 = arith.constant 0 : i32
    %c0_i32_0 = arith.constant 0 : i32
    %c0_i32_1 = arith.constant 0 : i32
    return %arg0, %c0_i32, %c0_i32_0 : i32, i32, i32
  }
}

module attributes {stable_mosaic.version = 11 : i64} {
  func.func @kernel(%arg0: i32, %arg1: memref<1x17x96xf32, #tpu.memory_space<vmem>>, %arg2: memref<3x104x96xf32, #tpu.memory_space<vmem>>, %arg3: memref<1x96xf32, #tpu.memory_space<vmem>>, %arg4: memref<1x96xf32, #tpu.memory_space<vmem>>, %arg5: memref<1x17x96xf32, #tpu.memory_space<vmem>>, %arg6: memref<19x104xf32, #tpu.memory_space<vmem>>) attributes {dimension_semantics = [#tpu.dimension_semantics<parallel>], iteration_bounds = array<i64: 2>, scalar_prefetch = 0 : i64, scratch_operands = 1 : i64, tpu.core_type = #tpu.core_type<tc>, window_params = [{transform_indices = @transform_0, window_bounds = array<i64: 1, 17, 96>}, {pipeline_mode = #tpu.pipeline_mode<synchronous>, transform_indices = @transform_1, window_bounds = array<i64: 3, 104, 96>}, {pipeline_mode = #tpu.pipeline_mode<synchronous>, transform_indices = @transform_2, window_bounds = array<i64: 1, 96>}, {pipeline_mode = #tpu.pipeline_mode<synchronous>, transform_indices = @transform_3, window_bounds = array<i64: 1, 96>}, {transform_indices = @transform_4, window_bounds = array<i64: 1, 17, 96>}]} {
    %cst = arith.constant 0.000000e+00 : f32
    %0 = vector.broadcast %cst : f32 to vector<17x96xf32>
    %cst_0 = arith.constant 0.000000e+00 : f32
    %1 = vector.broadcast %cst_0 : f32 to vector<19x104xf32>
    %c0 = arith.constant 0 : index
    %c0_1 = arith.constant 0 : index
    %2 = vector.load %arg6[%c0, %c0_1] : memref<19x104xf32, #tpu.memory_space<vmem>>, vector<19x104xf32>
    tpu.vector_store %arg6[%c0, %c0_1], %1 {strides = array<i32>} : memref<19x104xf32, #tpu.memory_space<vmem>>, vector<19x104xf32>,
    %c0_2 = arith.constant 0 : index
    %c0_3 = arith.constant 0 : index
    %c0_4 = arith.constant 0 : index
    %3 = vector.load %arg1[%c0_2, %c0_3, %c0_4] : memref<1x17x96xf32, #tpu.memory_space<vmem>>, vector<1x17x96xf32>
    %4 = vector.shape_cast %3 : vector<1x17x96xf32> to vector<17x96xf32>
    %c1 = arith.constant 1 : index
    %c4 = arith.constant 4 : index
    %5 = vector.load %arg6[%c1, %c4] : memref<19x104xf32, #tpu.memory_space<vmem>>, vector<17x96xf32>
    tpu.vector_store %arg6[%c1, %c4], %4 {strides = array<i32>} : memref<19x104xf32, #tpu.memory_space<vmem>>, vector<17x96xf32>,
    %c0_5 = arith.constant 0 : index
    %c0_6 = arith.constant 0 : index
    %6 = vector.load %arg6[%c0_5, %c0_6] : memref<19x104xf32, #tpu.memory_space<vmem>>, vector<17x104xf32>
    %c0_7 = arith.constant 0 : index
    %c0_8 = arith.constant 0 : index
    %c0_9 = arith.constant 0 : index
    %7 = vector.load %arg2[%c0_7, %c0_8, %c0_9] : memref<3x104x96xf32, #tpu.memory_space<vmem>>, vector<1x104x96xf32>
    %8 = vector.shape_cast %7 : vector<1x104x96xf32> to vector<104x96xf32>
    %cst_10 = arith.constant dense<0.000000e+00> : vector<17x96xf32>
    %9 = tpu.matmul %6, %8, %cst_10 {dimension_numbers = #tpu.dot_dimension_numbers<[1], [0], [0], [1], [0, 0, 1, 1], [], []>} : vector<17x104xf32>, vector<104x96xf32>, vector<17x96xf32> -> vector<17x96xf32>
    %10 = arith.addf %0, %9 : vector<17x96xf32>
    %c1_11 = arith.constant 1 : index
    %c0_12 = arith.constant 0 : index
    %11 = vector.load %arg6[%c1_11, %c0_12] : memref<19x104xf32, #tpu.memory_space<vmem>>, vector<17x104xf32>
    %c1_13 = arith.constant 1 : index
    %c0_14 = arith.constant 0 : index
    %c0_15 = arith.constant 0 : index
    %12 = vector.load %arg2[%c1_13, %c0_14, %c0_15] : memref<3x104x96xf32, #tpu.memory_space<vmem>>, vector<1x104x96xf32>
    %13 = vector.shape_cast %12 : vector<1x104x96xf32> to vector<104x96xf32>
    %cst_16 = arith.constant dense<0.000000e+00> : vector<17x96xf32>
    %14 = tpu.matmul %11, %13, %cst_16 {dimension_numbers = #tpu.dot_dimension_numbers<[1], [0], [0], [1], [0, 0, 1, 1], [], []>} : vector<17x104xf32>, vector<104x96xf32>, vector<17x96xf32> -> vector<17x96xf32>
    %15 = arith.addf %10, %14 : vector<17x96xf32>
    %c2 = arith.constant 2 : index
    %c0_17 = arith.constant 0 : index
    %16 = vector.load %arg6[%c2, %c0_17] : memref<19x104xf32, #tpu.memory_space<vmem>>, vector<17x104xf32>
    %c2_18 = arith.constant 2 : index
    %c0_19 = arith.constant 0 : index
    %c0_20 = arith.constant 0 : index
    %17 = vector.load %arg2[%c2_18, %c0_19, %c0_20] : memref<3x104x96xf32, #tpu.memory_space<vmem>>, vector<1x104x96xf32>
    %18 = vector.shape_cast %17 : vector<1x104x96xf32> to vector<104x96xf32>
    %cst_21 = arith.constant dense<0.000000e+00> : vector<17x96xf32>
    %19 = tpu.matmul %16, %18, %cst_21 {dimension_numbers = #tpu.dot_dimension_numbers<[1], [0], [0], [1], [0, 0, 1, 1], [], []>} : vector<17x104xf32>, vector<104x96xf32>, vector<17x96xf32> -> vector<17x96xf32>
    %20 = arith.addf %15, %19 : vector<17x96xf32>
    %c0_22 = arith.constant 0 : index
    %c0_23 = arith.constant 0 : index
    %21 = vector.load %arg3[%c0_22, %c0_23] : memref<1x96xf32, #tpu.memory_space<vmem>>, vector<1x96xf32>
    %22 = vector.broadcast %21 : vector<1x96xf32> to vector<17x96xf32>
    %23 = arith.mulf %20, %22 : vector<17x96xf32>
    %c0_24 = arith.constant 0 : index
    %c0_25 = arith.constant 0 : index
    %24 = vector.load %arg4[%c0_24, %c0_25] : memref<1x96xf32, #tpu.memory_space<vmem>>, vector<1x96xf32>
    %25 = vector.broadcast %24 : vector<1x96xf32> to vector<17x96xf32>
    %26 = arith.addf %23, %25 : vector<17x96xf32>
    %cst_26 = arith.constant 0.000000e+00 : f32
    %27 = vector.broadcast %cst_26 : f32 to vector<17x96xf32>
    %28 = arith.cmpf oge, %26, %27 : vector<17x96xf32>
    %cst_27 = arith.constant 0.00999999977 : f32
    %29 = vector.broadcast %cst_27 : f32 to vector<17x96xf32>
    %30 = arith.mulf %29, %26 : vector<17x96xf32>
    %31 = arith.select %28, %26, %30 : vector<17x96xi1>, vector<17x96xf32>
    %c0_28 = arith.constant 0 : index
    %c0_29 = arith.constant 0 : index
    %c0_30 = arith.constant 0 : index
    %32 = vector.load %arg5[%c0_28, %c0_29, %c0_30] : memref<1x17x96xf32, #tpu.memory_space<vmem>>, vector<1x17x96xf32>
    %33 = vector.shape_cast %32 : vector<1x17x96xf32> to vector<17x96xf32>
    %34 = vector.shape_cast %31 : vector<17x96xf32> to vector<1x17x96xf32>
    tpu.vector_store %arg5[%c0_28, %c0_29, %c0_30], %34 {strides = array<i32>} : memref<1x17x96xf32, #tpu.memory_space<vmem>>, vector<1x17x96xf32>,
    return
  }
  func.func @transform_0(%arg0: i32) -> (i32, i32, i32) {
    %c0_i32 = arith.constant 0 : i32
    %c0_i32_0 = arith.constant 0 : i32
    %c0_i32_1 = arith.constant 0 : i32
    return %arg0, %c0_i32, %c0_i32_0 : i32, i32, i32
  }
  func.func @transform_1(%arg0: i32) -> (i32, i32, i32) {
    %c0_i32 = arith.constant 0 : i32
    %c0_i32_0 = arith.constant 0 : i32
    %c0_i32_1 = arith.constant 0 : i32
    %c0_i32_2 = arith.constant 0 : i32
    return %c0_i32, %c0_i32_0, %c0_i32_1 : i32, i32, i32
  }
  func.func @transform_2(%arg0: i32) -> (i32, i32) {
    %c0_i32 = arith.constant 0 : i32
    %c0_i32_0 = arith.constant 0 : i32
    %c0_i32_1 = arith.constant 0 : i32
    return %c0_i32, %c0_i32_0 : i32, i32
  }
  func.func @transform_3(%arg0: i32) -> (i32, i32) {
    %c0_i32 = arith.constant 0 : i32
    %c0_i32_0 = arith.constant 0 : i32
    %c0_i32_1 = arith.constant 0 : i32
    return %c0_i32, %c0_i32_0 : i32, i32
  }
  func.func @transform_4(%arg0: i32) -> (i32, i32, i32) {
    %c0_i32 = arith.constant 0 : i32
    %c0_i32_0 = arith.constant 0 : i32
    %c0_i32_1 = arith.constant 0 : i32
    return %arg0, %c0_i32, %c0_i32_0 : i32, i32, i32
  }
}

module attributes {stable_mosaic.version = 11 : i64} {
  func.func @kernel(%arg0: i32, %arg1: memref<1x16x64xf32, #tpu.memory_space<vmem>>, %arg2: memref<1x17x96xf32, #tpu.memory_space<vmem>>, %arg3: memref<3x104x96xf32, #tpu.memory_space<vmem>>, %arg4: memref<3x104x96xf32, #tpu.memory_space<vmem>>, %arg5: memref<1x96xf32, #tpu.memory_space<vmem>>, %arg6: memref<1x96xf32, #tpu.memory_space<vmem>>, %arg7: memref<1x17x96xf32, #tpu.memory_space<vmem>>, %arg8: memref<19x104xf32, #tpu.memory_space<vmem>>, %arg9: memref<19x104xf32, #tpu.memory_space<vmem>>) attributes {dimension_semantics = [#tpu.dimension_semantics<parallel>], iteration_bounds = array<i64: 2>, scalar_prefetch = 0 : i64, scratch_operands = 2 : i64, tpu.core_type = #tpu.core_type<tc>, window_params = [{transform_indices = @transform_0, window_bounds = array<i64: 1, 16, 64>}, {transform_indices = @transform_1, window_bounds = array<i64: 1, 17, 96>}, {pipeline_mode = #tpu.pipeline_mode<synchronous>, transform_indices = @transform_2, window_bounds = array<i64: 3, 104, 96>}, {pipeline_mode = #tpu.pipeline_mode<synchronous>, transform_indices = @transform_3, window_bounds = array<i64: 3, 104, 96>}, {pipeline_mode = #tpu.pipeline_mode<synchronous>, transform_indices = @transform_4, window_bounds = array<i64: 1, 96>}, {pipeline_mode = #tpu.pipeline_mode<synchronous>, transform_indices = @transform_5, window_bounds = array<i64: 1, 96>}, {transform_indices = @transform_6, window_bounds = array<i64: 1, 17, 96>}]} {
    %cst = arith.constant 0.000000e+00 : f32
    %0 = vector.broadcast %cst : f32 to vector<17x96xf32>
    %cst_0 = arith.constant 0.000000e+00 : f32
    %1 = vector.broadcast %cst_0 : f32 to vector<19x104xf32>
    %c0 = arith.constant 0 : index
    %c0_1 = arith.constant 0 : index
    %2 = vector.load %arg8[%c0, %c0_1] : memref<19x104xf32, #tpu.memory_space<vmem>>, vector<19x104xf32>
    tpu.vector_store %arg8[%c0, %c0_1], %1 {strides = array<i32>} : memref<19x104xf32, #tpu.memory_space<vmem>>, vector<19x104xf32>,
    %c0_2 = arith.constant 0 : index
    %c0_3 = arith.constant 0 : index
    %c0_4 = arith.constant 0 : index
    %3 = vector.load %arg1[%c0_2, %c0_3, %c0_4] : memref<1x16x64xf32, #tpu.memory_space<vmem>>, vector<1x16x64xf32>
    %4 = vector.shape_cast %3 : vector<1x16x64xf32> to vector<16x64xf32>
    %c1 = arith.constant 1 : index
    %c20 = arith.constant 20 : index
    %5 = vector.load %arg8[%c1, %c20] : memref<19x104xf32, #tpu.memory_space<vmem>>, vector<16x64xf32>
    tpu.vector_store %arg8[%c1, %c20], %4 {strides = array<i32>} : memref<19x104xf32, #tpu.memory_space<vmem>>, vector<16x64xf32>,
    %c0_5 = arith.constant 0 : index
    %c0_6 = arith.constant 0 : index
    %6 = vector.load %arg8[%c0_5, %c0_6] : memref<19x104xf32, #tpu.memory_space<vmem>>, vector<17x104xf32>
    %c0_7 = arith.constant 0 : index
    %c0_8 = arith.constant 0 : index
    %c0_9 = arith.constant 0 : index
    %7 = vector.load %arg3[%c0_7, %c0_8, %c0_9] : memref<3x104x96xf32, #tpu.memory_space<vmem>>, vector<1x104x96xf32>
    %8 = vector.shape_cast %7 : vector<1x104x96xf32> to vector<104x96xf32>
    %cst_10 = arith.constant dense<0.000000e+00> : vector<17x96xf32>
    %9 = tpu.matmul %6, %8, %cst_10 {dimension_numbers = #tpu.dot_dimension_numbers<[1], [0], [0], [1], [0, 0, 1, 1], [], []>} : vector<17x104xf32>, vector<104x96xf32>, vector<17x96xf32> -> vector<17x96xf32>
    %10 = arith.addf %0, %9 : vector<17x96xf32>
    %c1_11 = arith.constant 1 : index
    %c0_12 = arith.constant 0 : index
    %11 = vector.load %arg8[%c1_11, %c0_12] : memref<19x104xf32, #tpu.memory_space<vmem>>, vector<17x104xf32>
    %c1_13 = arith.constant 1 : index
    %c0_14 = arith.constant 0 : index
    %c0_15 = arith.constant 0 : index
    %12 = vector.load %arg3[%c1_13, %c0_14, %c0_15] : memref<3x104x96xf32, #tpu.memory_space<vmem>>, vector<1x104x96xf32>
    %13 = vector.shape_cast %12 : vector<1x104x96xf32> to vector<104x96xf32>
    %cst_16 = arith.constant dense<0.000000e+00> : vector<17x96xf32>
    %14 = tpu.matmul %11, %13, %cst_16 {dimension_numbers = #tpu.dot_dimension_numbers<[1], [0], [0], [1], [0, 0, 1, 1], [], []>} : vector<17x104xf32>, vector<104x96xf32>, vector<17x96xf32> -> vector<17x96xf32>
    %15 = arith.addf %10, %14 : vector<17x96xf32>
    %c2 = arith.constant 2 : index
    %c0_17 = arith.constant 0 : index
    %16 = vector.load %arg8[%c2, %c0_17] : memref<19x104xf32, #tpu.memory_space<vmem>>, vector<17x104xf32>
    %c2_18 = arith.constant 2 : index
    %c0_19 = arith.constant 0 : index
    %c0_20 = arith.constant 0 : index
    %17 = vector.load %arg3[%c2_18, %c0_19, %c0_20] : memref<3x104x96xf32, #tpu.memory_space<vmem>>, vector<1x104x96xf32>
    %18 = vector.shape_cast %17 : vector<1x104x96xf32> to vector<104x96xf32>
    %cst_21 = arith.constant dense<0.000000e+00> : vector<17x96xf32>
    %19 = tpu.matmul %16, %18, %cst_21 {dimension_numbers = #tpu.dot_dimension_numbers<[1], [0], [0], [1], [0, 0, 1, 1], [], []>} : vector<17x104xf32>, vector<104x96xf32>, vector<17x96xf32> -> vector<17x96xf32>
    %20 = arith.addf %15, %19 : vector<17x96xf32>
    %cst_22 = arith.constant 0.000000e+00 : f32
    %21 = vector.broadcast %cst_22 : f32 to vector<19x104xf32>
    %c0_23 = arith.constant 0 : index
    %c0_24 = arith.constant 0 : index
    %22 = vector.load %arg9[%c0_23, %c0_24] : memref<19x104xf32, #tpu.memory_space<vmem>>, vector<19x104xf32>
    tpu.vector_store %arg9[%c0_23, %c0_24], %21 {strides = array<i32>} : memref<19x104xf32, #tpu.memory_space<vmem>>, vector<19x104xf32>,
    %c0_25 = arith.constant 0 : index
    %c0_26 = arith.constant 0 : index
    %c0_27 = arith.constant 0 : index
    %23 = vector.load %arg2[%c0_25, %c0_26, %c0_27] : memref<1x17x96xf32, #tpu.memory_space<vmem>>, vector<1x17x96xf32>
    %24 = vector.shape_cast %23 : vector<1x17x96xf32> to vector<17x96xf32>
    %c1_28 = arith.constant 1 : index
    %c4 = arith.constant 4 : index
    %25 = vector.load %arg9[%c1_28, %c4] : memref<19x104xf32, #tpu.memory_space<vmem>>, vector<17x96xf32>
    tpu.vector_store %arg9[%c1_28, %c4], %24 {strides = array<i32>} : memref<19x104xf32, #tpu.memory_space<vmem>>, vector<17x96xf32>,
    %c0_29 = arith.constant 0 : index
    %c0_30 = arith.constant 0 : index
    %26 = vector.load %arg9[%c0_29, %c0_30] : memref<19x104xf32, #tpu.memory_space<vmem>>, vector<17x104xf32>
    %c0_31 = arith.constant 0 : index
    %c0_32 = arith.constant 0 : index
    %c0_33 = arith.constant 0 : index
    %27 = vector.load %arg4[%c0_31, %c0_32, %c0_33] : memref<3x104x96xf32, #tpu.memory_space<vmem>>, vector<1x104x96xf32>
    %28 = vector.shape_cast %27 : vector<1x104x96xf32> to vector<104x96xf32>
    %cst_34 = arith.constant dense<0.000000e+00> : vector<17x96xf32>
    %29 = tpu.matmul %26, %28, %cst_34 {dimension_numbers = #tpu.dot_dimension_numbers<[1], [0], [0], [1], [0, 0, 1, 1], [], []>} : vector<17x104xf32>, vector<104x96xf32>, vector<17x96xf32> -> vector<17x96xf32>
    %30 = arith.addf %20, %29 : vector<17x96xf32>
    %c1_35 = arith.constant 1 : index
    %c0_36 = arith.constant 0 : index
    %31 = vector.load %arg9[%c1_35, %c0_36] : memref<19x104xf32, #tpu.memory_space<vmem>>, vector<17x104xf32>
    %c1_37 = arith.constant 1 : index
    %c0_38 = arith.constant 0 : index
    %c0_39 = arith.constant 0 : index
    %32 = vector.load %arg4[%c1_37, %c0_38, %c0_39] : memref<3x104x96xf32, #tpu.memory_space<vmem>>, vector<1x104x96xf32>
    %33 = vector.shape_cast %32 : vector<1x104x96xf32> to vector<104x96xf32>
    %cst_40 = arith.constant dense<0.000000e+00> : vector<17x96xf32>
    %34 = tpu.matmul %31, %33, %cst_40 {dimension_numbers = #tpu.dot_dimension_numbers<[1], [0], [0], [1], [0, 0, 1, 1], [], []>} : vector<17x104xf32>, vector<104x96xf32>, vector<17x96xf32> -> vector<17x96xf32>
    %35 = arith.addf %30, %34 : vector<17x96xf32>
    %c2_41 = arith.constant 2 : index
    %c0_42 = arith.constant 0 : index
    %36 = vector.load %arg9[%c2_41, %c0_42] : memref<19x104xf32, #tpu.memory_space<vmem>>, vector<17x104xf32>
    %c2_43 = arith.constant 2 : index
    %c0_44 = arith.constant 0 : index
    %c0_45 = arith.constant 0 : index
    %37 = vector.load %arg4[%c2_43, %c0_44, %c0_45] : memref<3x104x96xf32, #tpu.memory_space<vmem>>, vector<1x104x96xf32>
    %38 = vector.shape_cast %37 : vector<1x104x96xf32> to vector<104x96xf32>
    %cst_46 = arith.constant dense<0.000000e+00> : vector<17x96xf32>
    %39 = tpu.matmul %36, %38, %cst_46 {dimension_numbers = #tpu.dot_dimension_numbers<[1], [0], [0], [1], [0, 0, 1, 1], [], []>} : vector<17x104xf32>, vector<104x96xf32>, vector<17x96xf32> -> vector<17x96xf32>
    %40 = arith.addf %35, %39 : vector<17x96xf32>
    %c0_47 = arith.constant 0 : index
    %c0_48 = arith.constant 0 : index
    %41 = vector.load %arg5[%c0_47, %c0_48] : memref<1x96xf32, #tpu.memory_space<vmem>>, vector<1x96xf32>
    %42 = vector.broadcast %41 : vector<1x96xf32> to vector<17x96xf32>
    %43 = arith.mulf %40, %42 : vector<17x96xf32>
    %c0_49 = arith.constant 0 : index
    %c0_50 = arith.constant 0 : index
    %44 = vector.load %arg6[%c0_49, %c0_50] : memref<1x96xf32, #tpu.memory_space<vmem>>, vector<1x96xf32>
    %45 = vector.broadcast %44 : vector<1x96xf32> to vector<17x96xf32>
    %46 = arith.addf %43, %45 : vector<17x96xf32>
    %cst_51 = arith.constant 0.000000e+00 : f32
    %47 = vector.broadcast %cst_51 : f32 to vector<17x96xf32>
    %48 = arith.cmpf oge, %46, %47 : vector<17x96xf32>
    %cst_52 = arith.constant 0.00999999977 : f32
    %49 = vector.broadcast %cst_52 : f32 to vector<17x96xf32>
    %50 = arith.mulf %49, %46 : vector<17x96xf32>
    %51 = arith.select %48, %46, %50 : vector<17x96xi1>, vector<17x96xf32>
    %c0_53 = arith.constant 0 : index
    %c0_54 = arith.constant 0 : index
    %c0_55 = arith.constant 0 : index
    %52 = vector.load %arg7[%c0_53, %c0_54, %c0_55] : memref<1x17x96xf32, #tpu.memory_space<vmem>>, vector<1x17x96xf32>
    %53 = vector.shape_cast %52 : vector<1x17x96xf32> to vector<17x96xf32>
    %54 = vector.shape_cast %51 : vector<17x96xf32> to vector<1x17x96xf32>
    tpu.vector_store %arg7[%c0_53, %c0_54, %c0_55], %54 {strides = array<i32>} : memref<1x17x96xf32, #tpu.memory_space<vmem>>, vector<1x17x96xf32>,
    return
  }
  func.func @transform_0(%arg0: i32) -> (i32, i32, i32) {
    %c0_i32 = arith.constant 0 : i32
    %c0_i32_0 = arith.constant 0 : i32
    %c0_i32_1 = arith.constant 0 : i32
    return %arg0, %c0_i32, %c0_i32_0 : i32, i32, i32
  }
  func.func @transform_1(%arg0: i32) -> (i32, i32, i32) {
    %c0_i32 = arith.constant 0 : i32
    %c0_i32_0 = arith.constant 0 : i32
    %c0_i32_1 = arith.constant 0 : i32
    return %arg0, %c0_i32, %c0_i32_0 : i32, i32, i32
  }
  func.func @transform_2(%arg0: i32) -> (i32, i32, i32) {
    %c0_i32 = arith.constant 0 : i32
    %c0_i32_0 = arith.constant 0 : i32
    %c0_i32_1 = arith.constant 0 : i32
    %c0_i32_2 = arith.constant 0 : i32
    return %c0_i32, %c0_i32_0, %c0_i32_1 : i32, i32, i32
  }
  func.func @transform_3(%arg0: i32) -> (i32, i32, i32) {
    %c0_i32 = arith.constant 0 : i32
    %c0_i32_0 = arith.constant 0 : i32
    %c0_i32_1 = arith.constant 0 : i32
    %c0_i32_2 = arith.constant 0 : i32
    return %c0_i32, %c0_i32_0, %c0_i32_1 : i32, i32, i32
  }
  func.func @transform_4(%arg0: i32) -> (i32, i32) {
    %c0_i32 = arith.constant 0 : i32
    %c0_i32_0 = arith.constant 0 : i32
    %c0_i32_1 = arith.constant 0 : i32
    return %c0_i32, %c0_i32_0 : i32, i32
  }
  func.func @transform_5(%arg0: i32) -> (i32, i32) {
    %c0_i32 = arith.constant 0 : i32
    %c0_i32_0 = arith.constant 0 : i32
    %c0_i32_1 = arith.constant 0 : i32
    return %c0_i32, %c0_i32_0 : i32, i32
  }
  func.func @transform_6(%arg0: i32) -> (i32, i32, i32) {
    %c0_i32 = arith.constant 0 : i32
    %c0_i32_0 = arith.constant 0 : i32
    %c0_i32_1 = arith.constant 0 : i32
    return %arg0, %c0_i32, %c0_i32_0 : i32, i32, i32
  }
}

</mosaic_0001>

<llo_original>
// kernel: tile.48
$region0: #{tile.48}
  #allocation0 [shape = 's32[1]{0}', space=sflag, size = 0x4, scoped, tag = 'scoped memory for tile.48']
  %s0 = inlined_call_operand.vmem [shape: f32[4], index: 0, kind: input, shape index: {}]
  %s1 = inlined_call_operand.vmem [shape: f32[24,4], index: 1, kind: output, shape index: {}]
  // Predicated region
  $region2: #{tile.48} parent=0 // pred_check
    _
  $region3: #{tile.48} parent=0 // pred_check_branch
    %3 = sbr.rel (0) target = $region5
  $region4: #{tile.48} parent=0 // pred_region
    _
  $region5: #{tile.48} parent=0 // pred_fallthru
    _
  %v4 = vld [vmem:[%s0] ss:$0 sm:$0xff]
  %5 = vst [vmem:[%s1] sm:$0xff] %v4
  %s6 = scalar_lea.vmem %s1, 8
  %7 = vst [vmem:[%s6] sm:$0xff] %v4
  %s8 = scalar_lea.vmem %s1, 16
  %9 = vst [vmem:[%s8] sm:$0xff] %v4

// kernel: tile.49
$region0: #{tile.49}
  %s0 = inlined_call_operand.vmem [shape: f32[24,4], index: 0, kind: input, shape index: {}]
  %s1 = inlined_call_operand.vmem [shape: f32[1,96], index: 1, kind: output, shape index: {}]
  $region1: #{tile.49} parent=0
    #allocation0 [shape = 'u8[4096]{0}', space=vmem, size = 0x1000, scoped, tag = 'scoped mem for output reshape']
    %v2 = vld [vmem:[%s0] sm:$0x1]
    %vm3 = vcmask 31744
    %4 = vst.msk [vmem:[#allocation0] sm:$0x1] %vm3, %v2
    %s5 = scalar_lea.vmem %s0, 23
    %v6 = vld [vmem:[%s5] sm:$0x1]
    %7 = vrot.lane.b32.xlu0 %v6, 92
    %v8 = vpop.permute.xlu0 %7
    %vm9 = vcmask 786144
    %10 = vst.msk [vmem:[#allocation0] sm:$0x1] %vm9, %v8
    %s11 = scalar_lea.vmem %s0, 22
    %v12 = vld [vmem:[%s11] sm:$0x1]
    %13 = vrot.lane.b32.xlu0 %v12, 88
    %v14 = vpop.permute.xlu0 %13
    %vm15 = vcmask 753344
    %16 = vst.msk [vmem:[#allocation0] sm:$0x1] %vm15, %v14
    %s17 = scalar_lea.vmem %s0, 21
    %v18 = vld [vmem:[%s17] sm:$0x1]
    %19 = vrot.lane.b32.xlu0 %v18, 84
    %v20 = vpop.permute.xlu0 %19
    %vm21 = vcmask 720544
    %22 = vst.msk [vmem:[#allocation0] sm:$0x1] %vm21, %v20
    %s23 = scalar_lea.vmem %s0, 20
    %v24 = vld [vmem:[%s23] sm:$0x1]
    %25 = vrot.lane.b32.xlu0 %v24, 80
    %v26 = vpop.permute.xlu0 %25
    %vm27 = vcmask 687744
    %28 = vst.msk [vmem:[#allocation0] sm:$0x1] %vm27, %v26
    %s29 = scalar_lea.vmem %s0, 19
    %v30 = vld [vmem:[%s29] sm:$0x1]
    %31 = vrot.lane.b32.xlu0 %v30, 76
    %v32 = vpop.permute.xlu0 %31
    %vm33 = vcmask 654944
    %34 = vst.msk [vmem:[#allocation0] sm:$0x1] %vm33, %v32
    %s35 = scalar_lea.vmem %s0, 18
    %v36 = vld [vmem:[%s35] sm:$0x1]
    %37 = vrot.lane.b32.xlu0 %v36, 72
    %v38 = vpop.permute.xlu0 %37
    %vm39 = vcmask 622144
    %40 = vst.msk [vmem:[#allocation0] sm:$0x1] %vm39, %v38
    %s41 = scalar_lea.vmem %s0, 17
    %v42 = vld [vmem:[%s41] sm:$0x1]
    %43 = vrot.lane.b32.xlu0 %v42, 68
    %v44 = vpop.permute.xlu0 %43
    %vm45 = vcmask 589344
    %46 = vst.msk [vmem:[#allocation0] sm:$0x1] %vm45, %v44
    %s47 = scalar_lea.vmem %s0, 16
    %v48 = vld [vmem:[%s47] sm:$0x1]
    %49 = vrot.lane.b32.xlu0 %v48, 64
    %v50 = vpop.permute.xlu0 %49
    %vm51 = vcmask 556544
    %52 = vst.msk [vmem:[#allocation0] sm:$0x1] %vm51, %v50
    %s53 = scalar_lea.vmem %s0, 15
    %v54 = vld [vmem:[%s53] sm:$0x1]
    %55 = vrot.lane.b32.xlu0 %v54, 60
    %v56 = vpop.permute.xlu0 %55
    %vm57 = vcmask 523744
    %58 = vst.msk [vmem:[#allocation0] sm:$0x1] %vm57, %v56
    %s59 = scalar_lea.vmem %s0, 14
    %v60 = vld [vmem:[%s59] sm:$0x1]
    %61 = vrot.lane.b32.xlu0 %v60, 56
    %v62 = vpop.permute.xlu0 %61
    %vm63 = vcmask 490944
    %64 = vst.msk [vmem:[#allocation0] sm:$0x1] %vm63, %v62
    %s65 = scalar_lea.vmem %s0, 13
    %v66 = vld [vmem:[%s65] sm:$0x1]
    %67 = vrot.lane.b32.xlu0 %v66, 52
    %v68 = vpop.permute.xlu0 %67
    %vm69 = vcmask 458144
    %70 = vst.msk [vmem:[#allocation0] sm:$0x1] %vm69, %v68
    %s71 = scalar_lea.vmem %s0, 12
    %v72 = vld [vmem:[%s71] sm:$0x1]
    %73 = vrot.lane.b32.xlu0 %v72, 48
    %v74 = vpop.permute.xlu0 %73
    %vm75 = vcmask 425344
    %76 = vst.msk [vmem:[#allocation0] sm:$0x1] %vm75, %v74
    %s77 = scalar_lea.vmem %s0, 11
    %v78 = vld [vmem:[%s77] sm:$0x1]
    %79 = vrot.lane.b32.xlu0 %v78, 44
    %v80 = vpop.permute.xlu0 %79
    %vm81 = vcmask 392544
    %82 = vst.msk [vmem:[#allocation0] sm:$0x1] %vm81, %v80
    %s83 = scalar_lea.vmem %s0, 10
    %v84 = vld [vmem:[%s83] sm:$0x1]
    %85 = vrot.lane.b32.xlu0 %v84, 40
    %v86 = vpop.permute.xlu0 %85
    %vm87 = vcmask 359744
    %88 = vst.msk [vmem:[#allocation0] sm:$0x1] %vm87, %v86
    %s89 = scalar_lea.vmem %s0, 9
    %v90 = vld [vmem:[%s89] sm:$0x1]
    %91 = vrot.lane.b32.xlu0 %v90, 36
    %v92 = vpop.permute.xlu0 %91
    %vm93 = vcmask 326944
    %94 = vst.msk [vmem:[#allocation0] sm:$0x1] %vm93, %v92
    %s95 = scalar_lea.vmem %s0, 8
    %v96 = vld [vmem:[%s95] sm:$0x1]
    %97 = vrot.lane.b32.xlu0 %v96, 32
    %v98 = vpop.permute.xlu0 %97
    %vm99 = vcmask 294144
    %100 = vst.msk [vmem:[#allocation0] sm:$0x1] %vm99, %v98
    %s101 = scalar_lea.vmem %s0, 7
    %v102 = vld [vmem:[%s101] sm:$0x1]
    %103 = vrot.lane.b32.xlu0 %v102, 28
    %v104 = vpop.permute.xlu0 %103
    %vm105 = vcmask 261344
    %106 = vst.msk [vmem:[#allocation0] sm:$0x1] %vm105, %v104
    %s107 = scalar_lea.vmem %s0, 6
    %v108 = vld [vmem:[%s107] sm:$0x1]
    %109 = vrot.lane.b32.xlu0 %v108, 24
    %v110 = vpop.permute.xlu0 %109
    %vm111 = vcmask 228544
    %112 = vst.msk [vmem:[#allocation0] sm:$0x1] %vm111, %v110
    %s113 = scalar_lea.vmem %s0, 5
    %v114 = vld [vmem:[%s113] sm:$0x1]
    %115 = vrot.lane.b32.xlu0 %v114, 20
    %v116 = vpop.permute.xlu0 %115
    %vm117 = vcmask 195744
    %118 = vst.msk [vmem:[#allocation0] sm:$0x1] %vm117, %v116
    %s119 = scalar_lea.vmem %s0, 4
    %v120 = vld [vmem:[%s119] sm:$0x1]
    %121 = vrot.lane.b32.xlu0 %v120, 16
    %v122 = vpop.permute.xlu0 %121
    %vm123 = vcmask 162944
    %124 = vst.msk [vmem:[#allocation0] sm:$0x1] %vm123, %v122
    %s125 = scalar_lea.vmem %s0, 3
    %v126 = vld [vmem:[%s125] sm:$0x1]
    %127 = vrot.lane.b32.xlu0 %v126, 12
    %v128 = vpop.permute.xlu0 %127
    %vm129 = vcmask 130144
    %130 = vst.msk [vmem:[#allocation0] sm:$0x1] %vm129, %v128
    %s131 = scalar_lea.vmem %s0, 2
    %v132 = vld [vmem:[%s131] sm:$0x1]
    %133 = vrot.lane.b32.xlu0 %v132, 8
    %v134 = vpop.permute.xlu0 %133
    %vm135 = vcmask 97344
    %136 = vst.msk [vmem:[#allocation0] sm:$0x1] %vm135, %v134
    %s137 = scalar_lea.vmem %s0, 1
    %v138 = vld [vmem:[%s137] sm:$0x1]
    %139 = vrot.lane.b32.xlu0 %v138, 4
    %v140 = vpop.permute.xlu0 %139
    %vm141 = vcmask 64544
    %142 = vst.msk [vmem:[#allocation0] sm:$0x1] %vm141, %v140
    %s144 = sshll.u32 1, 1
    %s145 = ssub.s32 %s144, 1
    %v147 = vld [vmem:[#allocation0] sm:%s145]
    %s148 = sshll.u32 1, 1
    %s149 = ssub.s32 %s148, 1
    %150 = vst [vmem:[%s1] sm:%s149] %v147

// kernel: tile.28
$region0: #{tile.28}
  #allocation0 [shape = 's32[1]{0}', space=sflag, size = 0x4, scoped, tag = 'scoped memory for tile.28']
  %s0 = inlined_call_operand.vmem [shape: f32[4], index: 0, kind: input, shape index: {}]
  %s1 = inlined_call_operand.vmem [shape: f32[32,4], index: 1, kind: output, shape index: {}]
  // Predicated region
  $region2: #{tile.28} parent=0 // pred_check
    _
  $region3: #{tile.28} parent=0 // pred_check_branch
    %3 = sbr.rel (0) target = $region5
  $region4: #{tile.28} parent=0 // pred_region
    _
  $region5: #{tile.28} parent=0 // pred_fallthru
    _
  %v4 = vld [vmem:[%s0] ss:$0 sm:$0xff]
  %5 = vst [vmem:[%s1] sm:$0xff] %v4
  %s6 = scalar_lea.vmem %s1, 8
  %7 = vst [vmem:[%s6] sm:$0xff] %v4
  %s8 = scalar_lea.vmem %s1, 16
  %9 = vst [vmem:[%s8] sm:$0xff] %v4
  %s10 = scalar_lea.vmem %s1, 24
  %11 = vst [vmem:[%s10] sm:$0xff] %v4

// kernel: tile.29
$region0: #{tile.29}
  %s0 = inlined_call_operand.vmem [shape: f32[32,4], index: 0, kind: input, shape index: {}]
  %s1 = inlined_call_operand.vmem [shape: f32[1,128], index: 1, kind: output, shape index: {}]
  $region1: #{tile.29} parent=0
    #allocation0 [shape = 'u8[4096]{0}', space=vmem, size = 0x1000, scoped, tag = 'scoped mem for output reshape']
    %v2 = vld [vmem:[%s0] sm:$0x1]
    %vm3 = vcmask 31744
    %4 = vst.msk [vmem:[#allocation0] sm:$0x1] %vm3, %v2
    %s5 = scalar_lea.vmem %s0, 31
    %v6 = vld [vmem:[%s5] sm:$0x1]
    %7 = vrot.lane.b32.xlu0 %v6, 124
    %v8 = vpop.permute.xlu0 %7
    %vm9 = vcmask 1048544
    %10 = vst.msk [vmem:[#allocation0] sm:$0x1] %vm9, %v8
    %s11 = scalar_lea.vmem %s0, 30
    %v12 = vld [vmem:[%s11] sm:$0x1]
    %13 = vrot.lane.b32.xlu0 %v12, 120
    %v14 = vpop.permute.xlu0 %13
    %vm15 = vcmask 1015744
    %16 = vst.msk [vmem:[#allocation0] sm:$0x1] %vm15, %v14
    %s17 = scalar_lea.vmem %s0, 29
    %v18 = vld [vmem:[%s17] sm:$0x1]
    %19 = vrot.lane.b32.xlu0 %v18, 116
    %v20 = vpop.permute.xlu0 %19
    %vm21 = vcmask 982944
    %22 = vst.msk [vmem:[#allocation0] sm:$0x1] %vm21, %v20
    %s23 = scalar_lea.vmem %s0, 28
    %v24 = vld [vmem:[%s23] sm:$0x1]
    %25 = vrot.lane.b32.xlu0 %v24, 112
    %v26 = vpop.permute.xlu0 %25
    %vm27 = vcmask 950144
    %28 = vst.msk [vmem:[#allocation0] sm:$0x1] %vm27, %v26
    %s29 = scalar_lea.vmem %s0, 27
    %v30 = vld [vmem:[%s29] sm:$0x1]
    %31 = vrot.lane.b32.xlu0 %v30, 108
    %v32 = vpop.permute.xlu0 %31
    %vm33 = vcmask 917344
    %34 = vst.msk [vmem:[#allocation0] sm:$0x1] %vm33, %v32
    %s35 = scalar_lea.vmem %s0, 26
    %v36 = vld [vmem:[%s35] sm:$0x1]
    %37 = vrot.lane.b32.xlu0 %v36, 104
    %v38 = vpop.permute.xlu0 %37
    %vm39 = vcmask 884544
    %40 = vst.msk [vmem:[#allocation0] sm:$0x1] %vm39, %v38
    %s41 = scalar_lea.vmem %s0, 25
    %v42 = vld [vmem:[%s41] sm:$0x1]
    %43 = vrot.lane.b32.xlu0 %v42, 100
    %v44 = vpop.permute.xlu0 %43
    %vm45 = vcmask 851744
    %46 = vst.msk [vmem:[#allocation0] sm:$0x1] %vm45, %v44
    %s47 = scalar_lea.vmem %s0, 24
    %v48 = vld [vmem:[%s47] sm:$0x1]
    %49 = vrot.lane.b32.xlu0 %v48, 96
    %v50 = vpop.permute.xlu0 %49
    %vm51 = vcmask 818944
    %52 = vst.msk [vmem:[#allocation0] sm:$0x1] %vm51, %v50
    %s53 = scalar_lea.vmem %s0, 23
    %v54 = vld [vmem:[%s53] sm:$0x1]
    %55 = vrot.lane.b32.xlu0 %v54, 92
    %v56 = vpop.permute.xlu0 %55
    %vm57 = vcmask 786144
    %58 = vst.msk [vmem:[#allocation0] sm:$0x1] %vm57, %v56
    %s59 = scalar_lea.vmem %s0, 22
    %v60 = vld [vmem:[%s59] sm:$0x1]
    %61 = vrot.lane.b32.xlu0 %v60, 88
    %v62 = vpop.permute.xlu0 %61
    %vm63 = vcmask 753344
    %64 = vst.msk [vmem:[#allocation0] sm:$0x1] %vm63, %v62
    %s65 = scalar_lea.vmem %s0, 21
    %v66 = vld [vmem:[%s65] sm:$0x1]
    %67 = vrot.lane.b32.xlu0 %v66, 84
    %v68 = vpop.permute.xlu0 %67
    %vm69 = vcmask 720544
    %70 = vst.msk [vmem:[#allocation0] sm:$0x1] %vm69, %v68
    %s71 = scalar_lea.vmem %s0, 20
    %v72 = vld [vmem:[%s71] sm:$0x1]
    %73 = vrot.lane.b32.xlu0 %v72, 80
    %v74 = vpop.permute.xlu0 %73
    %vm75 = vcmask 687744
    %76 = vst.msk [vmem:[#allocation0] sm:$0x1] %vm75, %v74
    %s77 = scalar_lea.vmem %s0, 19
    %v78 = vld [vmem:[%s77] sm:$0x1]
    %79 = vrot.lane.b32.xlu0 %v78, 76
    %v80 = vpop.permute.xlu0 %79
    %vm81 = vcmask 654944
    %82 = vst.msk [vmem:[#allocation0] sm:$0x1] %vm81, %v80
    %s83 = scalar_lea.vmem %s0, 18
    %v84 = vld [vmem:[%s83] sm:$0x1]
    %85 = vrot.lane.b32.xlu0 %v84, 72
    %v86 = vpop.permute.xlu0 %85
    %vm87 = vcmask 622144
    %88 = vst.msk [vmem:[#allocation0] sm:$0x1] %vm87, %v86
    %s89 = scalar_lea.vmem %s0, 17
    %v90 = vld [vmem:[%s89] sm:$0x1]
    %91 = vrot.lane.b32.xlu0 %v90, 68
    %v92 = vpop.permute.xlu0 %91
    %vm93 = vcmask 589344
    %94 = vst.msk [vmem:[#allocation0] sm:$0x1] %vm93, %v92
    %s95 = scalar_lea.vmem %s0, 16
    %v96 = vld [vmem:[%s95] sm:$0x1]
    %97 = vrot.lane.b32.xlu0 %v96, 64
    %v98 = vpop.permute.xlu0 %97
    %vm99 = vcmask 556544
    %100 = vst.msk [vmem:[#allocation0] sm:$0x1] %vm99, %v98
    %s101 = scalar_lea.vmem %s0, 15
    %v102 = vld [vmem:[%s101] sm:$0x1]
    %103 = vrot.lane.b32.xlu0 %v102, 60
    %v104 = vpop.permute.xlu0 %103
    %vm105 = vcmask 523744
    %106 = vst.msk [vmem:[#allocation0] sm:$0x1] %vm105, %v104
    %s107 = scalar_lea.vmem %s0, 14
    %v108 = vld [vmem:[%s107] sm:$0x1]
    %109 = vrot.lane.b32.xlu0 %v108, 56
    %v110 = vpop.permute.xlu0 %109
    %vm111 = vcmask 490944
    %112 = vst.msk [vmem:[#allocation0] sm:$0x1] %vm111, %v110
    %s113 = scalar_lea.vmem %s0, 13
    %v114 = vld [vmem:[%s113] sm:$0x1]
    %115 = vrot.lane.b32.xlu0 %v114, 52
    %v116 = vpop.permute.xlu0 %115
    %vm117 = vcmask 458144
    %118 = vst.msk [vmem:[#allocation0] sm:$0x1] %vm117, %v116
    %s119 = scalar_lea.vmem %s0, 12
    %v120 = vld [vmem:[%s119] sm:$0x1]
    %121 = vrot.lane.b32.xlu0 %v120, 48
    %v122 = vpop.permute.xlu0 %121
    %vm123 = vcmask 425344
    %124 = vst.msk [vmem:[#allocation0] sm:$0x1] %vm123, %v122
    %s125 = scalar_lea.vmem %s0, 11
    %v126 = vld [vmem:[%s125] sm:$0x1]
    %127 = vrot.lane.b32.xlu0 %v126, 44
    %v128 = vpop.permute.xlu0 %127
    %vm129 = vcmask 392544
    %130 = vst.msk [vmem:[#allocation0] sm:$0x1] %vm129, %v128
    %s131 = scalar_lea.vmem %s0, 10
    %v132 = vld [vmem:[%s131] sm:$0x1]
    %133 = vrot.lane.b32.xlu0 %v132, 40
    %v134 = vpop.permute.xlu0 %133
    %vm135 = vcmask 359744
    %136 = vst.msk [vmem:[#allocation0] sm:$0x1] %vm135, %v134
    %s137 = scalar_lea.vmem %s0, 9
    %v138 = vld [vmem:[%s137] sm:$0x1]
    %139 = vrot.lane.b32.xlu0 %v138, 36
    %v140 = vpop.permute.xlu0 %139
    %vm141 = vcmask 326944
    %142 = vst.msk [vmem:[#allocation0] sm:$0x1] %vm141, %v140
    %s143 = scalar_lea.vmem %s0, 8
    %v144 = vld [vmem:[%s143] sm:$0x1]
    %145 = vrot.lane.b32.xlu0 %v144, 32
    %v146 = vpop.permute.xlu0 %145
    %vm147 = vcmask 294144
    %148 = vst.msk [vmem:[#allocation0] sm:$0x1] %vm147, %v146
    %s149 = scalar_lea.vmem %s0, 7
    %v150 = vld [vmem:[%s149] sm:$0x1]
    %151 = vrot.lane.b32.xlu0 %v150, 28
    %v152 = vpop.permute.xlu0 %151
    %vm153 = vcmask 261344
    %154 = vst.msk [vmem:[#allocation0] sm:$0x1] %vm153, %v152
    %s155 = scalar_lea.vmem %s0, 6
    %v156 = vld [vmem:[%s155] sm:$0x1]
    %157 = vrot.lane.b32.xlu0 %v156, 24
    %v158 = vpop.permute.xlu0 %157
    %vm159 = vcmask 228544
    %160 = vst.msk [vmem:[#allocation0] sm:$0x1] %vm159, %v158
    %s161 = scalar_lea.vmem %s0, 5
    %v162 = vld [vmem:[%s161] sm:$0x1]
    %163 = vrot.lane.b32.xlu0 %v162, 20
    %v164 = vpop.permute.xlu0 %163
    %vm165 = vcmask 195744
    %166 = vst.msk [vmem:[#allocation0] sm:$0x1] %vm165, %v164
    %s167 = scalar_lea.vmem %s0, 4
    %v168 = vld [vmem:[%s167] sm:$0x1]
    %169 = vrot.lane.b32.xlu0 %v168, 16
    %v170 = vpop.permute.xlu0 %169
    %vm171 = vcmask 162944
    %172 = vst.msk [vmem:[#allocation0] sm:$0x1] %vm171, %v170
    %s173 = scalar_lea.vmem %s0, 3
    %v174 = vld [vmem:[%s173] sm:$0x1]
    %175 = vrot.lane.b32.xlu0 %v174, 12
    %v176 = vpop.permute.xlu0 %175
    %vm177 = vcmask 130144
    %178 = vst.msk [vmem:[#allocation0] sm:$0x1] %vm177, %v176
    %s179 = scalar_lea.vmem %s0, 2
    %v180 = vld [vmem:[%s179] sm:$0x1]
    %181 = vrot.lane.b32.xlu0 %v180, 8
    %v182 = vpop.permute.xlu0 %181
    %vm183 = vcmask 97344
    %184 = vst.msk [vmem:[#allocation0] sm:$0x1] %vm183, %v182
    %s185 = scalar_lea.vmem %s0, 1
    %v186 = vld [vmem:[%s185] sm:$0x1]
    %187 = vrot.lane.b32.xlu0 %v186, 4
    %v188 = vpop.permute.xlu0 %187
    %vm189 = vcmask 64544
    %190 = vst.msk [vmem:[#allocation0] sm:$0x1] %vm189, %v188
    %s192 = sshll.u32 1, 1
    %s193 = ssub.s32 %s192, 1
    %v195 = vld [vmem:[#allocation0] sm:%s193]
    %s196 = sshll.u32 1, 1
    %s197 = ssub.s32 %s196, 1
    %198 = vst [vmem:[%s1] sm:%s197] %v195

// kernel: conv_decoder_forward.3
$region0: #{conv_decoder_forward.3}
  #allocation0 [shape = 'u32[]', space=smem, size = 0x4, offset = 0x4, fixed_abs, tag = 'smem constant byte address 0x4 - core index']
  #allocation1 [shape = 'u32[144,128]{1,0:T(1,128)}', space=vmem, size = 0x12000, scoped, tag = 'internal scratch']
  %s0 = inlined_call_operand.vmem [shape: f32[2,8,64], index: 0, kind: input, shape index: {}]
  %s1 = inlined_call_operand.vmem [shape: f32[64,128], index: 1, kind: input, shape index: {}]
  %s2 = inlined_call_operand.vmem [shape: f32[1,128], index: 2, kind: input, shape index: {}]
  %s3 = inlined_call_operand.vmem [shape: f32[2,8,128], index: 3, kind: output, shape index: {}]
  %s4 = sld [smem:[#allocation0]]
  $region45: #{conv_decoder_forward.3} parent=0
    _
  %s6 = ssub.s32 1, %s4
  %s7 = scalar_select 0, %s6, %s4
  loop: start=0, step=1, limit=4
  $region2: #{conv_decoder_forward.3} parent=0 // loop_pre_header
    _
  $region3: #{conv_decoder_forward.3} parent=0 // loop_header
    %s9 = sphi 0, %s13
    %p10 = scmp.ge.s32.totalorder %s9, 4
    %s19 = sphi 0, %s21
    %s22 = sphi 0, %s19
    %s23 = sphi 0, %s22
    %s39 = sphi 0, %s23
    %s43 = sphi 0, %s43
    %s45 = sphi 0, %s43
    %s46 = sphi 0, %s45
    %s60 = sphi 0, %s46
    %s64 = sphi 0, %s64
    %s66 = sphi 0, %s64
    %s67 = sphi 0, %s66
    %s81 = sphi 0, %s67
    %s87 = sphi 0, %s89
    %s90 = sphi 0, %s87
    %s91 = sphi 0, %s90
    %s107 = sphi 0, %s91
  $region4: #{conv_decoder_forward.3} parent=0 // loop_header_branch
    %12 = sbr.rel (%p10) target = $region8
  $region5: #{conv_decoder_forward.3} parent=0 // loop_body
    %s14 = ssub.s32 %s9, 1
    %s15 = ssub.s32 %s9, 2
    %s16 = sadd.s32 %s9, 1
    %s17 = ssub.s32 %s9, %s16
    %p18 = scmp.eq.s32.totalorder %s17, 0
    %s20 = sadd.s32 %s19, 1
    %s21 = scalar_select %p18, %s19, %s20
    %p24 = pneg %p18
    %p25 = scmp.eq.s32.totalorder %s9, 1
    %p26 = por %p24, %p25
    %p27 = scmp.ne.s32.totalorder %s19, %s22
    %p28 = scmp.eq.s32.totalorder %s9, 0
    %p29 = por %p27, %p28
    %p30 = scmp.ne.s32.totalorder %s19, %s22
    %p31 = scmp.eq.s32.totalorder %s14, 1
    %p32 = por %p30, %p31
    %p33 = scmp.ne.s32.totalorder %s22, %s23
    %p34 = scmp.eq.s32.totalorder %s14, 0
    %p35 = por %p33, %p34
    %p36 = scmp.ne.s32.totalorder %s22, %s23
    %p37 = scmp.eq.s32.totalorder %s15, 1
    %p38 = por %p36, %p37
    %p40 = scmp.ne.s32.totalorder %s23, %s39
    %p41 = scmp.eq.s32.totalorder %s15, 0
    %p42 = por %p40, %p41
    %s44 = sadd.s32 %s43, 1
    %p47 = scmp.eq.s32.totalorder %s9, 1
    %p48 = scmp.ne.s32.totalorder %s43, %s45
    %p49 = scmp.eq.s32.totalorder %s9, 0
    %p50 = por %p48, %p49
    %p51 = scmp.ne.s32.totalorder %s43, %s45
    %p52 = scmp.eq.s32.totalorder %s14, 1
    %p53 = por %p51, %p52
    %p54 = scmp.ne.s32.totalorder %s45, %s46
    %p55 = scmp.eq.s32.totalorder %s14, 0
    %p56 = por %p54, %p55
    %p57 = scmp.ne.s32.totalorder %s45, %s46
    %p58 = scmp.eq.s32.totalorder %s15, 1
    %p59 = por %p57, %p58
    %p61 = scmp.ne.s32.totalorder %s46, %s60
    %p62 = scmp.eq.s32.totalorder %s15, 0
    %p63 = por %p61, %p62
    %s65 = sadd.s32 %s64, 1
    %p68 = scmp.eq.s32.totalorder %s9, 1
    %p69 = scmp.ne.s32.totalorder %s64, %s66
    %p70 = scmp.eq.s32.totalorder %s9, 0
    %p71 = por %p69, %p70
    %p72 = scmp.ne.s32.totalorder %s64, %s66
    %p73 = scmp.eq.s32.totalorder %s14, 1
    %p74 = por %p72, %p73
    %p75 = scmp.ne.s32.totalorder %s66, %s67
    %p76 = scmp.eq.s32.totalorder %s14, 0
    %p77 = por %p75, %p76
    %p78 = scmp.ne.s32.totalorder %s66, %s67
    %p79 = scmp.eq.s32.totalorder %s15, 1
    %p80 = por %p78, %p79
    %p82 = scmp.ne.s32.totalorder %s67, %s81
    %p83 = scmp.eq.s32.totalorder %s15, 0
    %p84 = por %p82, %p83
    %s85 = ssub.s32 %s9, %s16
    %p86 = scmp.eq.s32.totalorder %s85, 0
    %s88 = sadd.s32 %s87, 1
    %s89 = scalar_select %p86, %s87, %s88
    %p92 = pneg %p86
    %p93 = scmp.eq.s32.totalorder %s9, 1
    %p94 = por %p92, %p93
    %p95 = scmp.ne.s32.totalorder %s87, %s90
    %p96 = scmp.eq.s32.totalorder %s9, 0
    %p97 = por %p95, %p96
    %p98 = scmp.ne.s32.totalorder %s87, %s90
    %p99 = scmp.eq.s32.totalorder %s14, 1
    %p100 = por %p98, %p99
    %p101 = scmp.ne.s32.totalorder %s90, %s91
    %p102 = scmp.eq.s32.totalorder %s14, 0
    %p103 = por %p101, %p102
    %p104 = scmp.ne.s32.totalorder %s90, %s91
    %p105 = scmp.eq.s32.totalorder %s15, 1
    %p106 = por %p104, %p105
    %p108 = scmp.ne.s32.totalorder %s91, %s107
    %p109 = scmp.eq.s32.totalorder %s15, 0
    %p110 = por %p108, %p109
    %p111 = scmp.le.s32.totalorder 1, %s9
    %p112 = scmp.lt.s32.totalorder %s9, 3
    %p113 = pnand %p111, %p112
    %p114 = pneg %p113
    // Predicated region
    $region9: #{conv_decoder_forward.3} parent=5 // pred_check
      _
    $region10: #{conv_decoder_forward.3} parent=5 // pred_check_branch
      %116 = sbr.rel (%p113) target = $region12
    $region11: #{conv_decoder_forward.3} parent=5 // pred_region
      %s117 = ssub.s32 %s9, 1
      // Predicated region
      $region13: #{conv_decoder_forward.3} parent=11 // pred_check
        %p118 = pneg %p56
      $region14: #{conv_decoder_forward.3} parent=11 // pred_check_branch
        %120 = sbr.rel (%p118) target = $region16
      $region15: #{conv_decoder_forward.3} parent=11 // pred_region
        _
      $region16: #{conv_decoder_forward.3} parent=11 // pred_fallthru
        _
      // Predicated region
      $region17: #{conv_decoder_forward.3} parent=11 // pred_check
        %p121 = pneg %p77
      $region18: #{conv_decoder_forward.3} parent=11 // pred_check_branch
        %123 = sbr.rel (%p121) target = $region20
      $region19: #{conv_decoder_forward.3} parent=11 // pred_region
        _
      $region20: #{conv_decoder_forward.3} parent=11 // pred_fallthru
        _
    $region12: #{conv_decoder_forward.3} parent=5 // pred_fallthru
      _
    %p124 = scmp.lt.s32.totalorder %s9, 2
    // Predicated region
    $region21: #{conv_decoder_forward.3} parent=5 // pred_check
      %p125 = pneg %p124
    $region22: #{conv_decoder_forward.3} parent=5 // pred_check_branch
      %127 = sbr.rel (%p125) target = $region24
    $region23: #{conv_decoder_forward.3} parent=5 // pred_region
      // Predicated region
      $region25: #{conv_decoder_forward.3} parent=23 // pred_check
        %p128 = pneg %p29
      $region26: #{conv_decoder_forward.3} parent=23 // pred_check_branch
        %130 = sbr.rel (%p128) target = $region28
      $region27: #{conv_decoder_forward.3} parent=23 // pred_region
        %p131 = scmp.lt.s32.totalorder %s9, 1
        %s132 = scalar_select %p131, %s9, 1
        %s133 = smul.addr %s132, 8
        %s134 = scalar_lea.vmem %s0, %s133
      $region28: #{conv_decoder_forward.3} parent=23 // pred_fallthru
        _
    $region24: #{conv_decoder_forward.3} parent=5 // pred_fallthru
      _
    %p135 = scmp.le.s32.totalorder 1, %s9
    %p136 = scmp.lt.s32.totalorder %s9, 3
    %p137 = pnand %p135, %p136
    %p138 = pneg %p137
    // Predicated region
    $region29: #{conv_decoder_forward.3} parent=5 // pred_check
      _
    $region30: #{conv_decoder_forward.3} parent=5 // pred_check_branch
      %140 = sbr.rel (%p137) target = $region32
    $region31: #{conv_decoder_forward.3} parent=5 // pred_region
      %s141 = ssub.s32 %s9, 1
      %p142 = scmp.lt.s32.totalorder %s14, 1
      %s143 = scalar_select %p142, %s14, 1
      %s144 = smul.addr %s143, 8
      %s145 = scalar_lea.vmem %s0, %s144
      %p146 = pneg %p35
      %p147 = pneg %p32
      %p148 = pneg %p56
      %p149 = pneg %p53
      %p150 = pneg %p77
      %p151 = pneg %p74
      %p152 = pneg %p103
      %p153 = pneg %p100
      %p154 = scmp.lt.s32.totalorder %s14, 1
      %s155 = scalar_select %p154, %s14, 1
      %s156 = smul.addr %s155, 8
      %s157 = scalar_lea.vmem %s3, %s156
      %p158 = scmp.lt.s32.totalorder %s14, 1
      %s159 = scalar_select %p158, %s14, 1
      %s160 = smul.addr %s159, 8
      %s161 = scalar_lea.vmem %s0, %s160
      %p162 = scmp.lt.s32.totalorder %s14, 1
      %s163 = scalar_select %p162, %s14, 1
      %s164 = smul.addr %s163, 8
      %s165 = scalar_lea.vmem %s3, %s164
      %v166 = vld [vmem:[%s161] sm:$0xff]
      %v167 = vld [vmem:[%s1] sm:$0xff]
      %v168 = vld [vmem:[%s1 + $0x8] sm:$0xff]
      %v169 = vld [vmem:[%s1 + $0x10] sm:$0xff]
      %v170 = vld [vmem:[%s1 + $0x18] sm:$0xff]
      %v171 = vld [vmem:[%s1 + $0x20] sm:$0xff]
      %v172 = vld [vmem:[%s1 + $0x28] sm:$0xff]
      %v173 = vld [vmem:[%s1 + $0x30] sm:$0xff]
      %v174 = vld [vmem:[%s1 + $0x38] sm:$0xff]
      %v175 = vld [vmem:[%s2] sm:$0x1]
      %v177 = vlaneseq
      %v178 = vshrl.u32 %v177, 7
      %v179 = vsub.s32 0, %v178
      %v180 = vrot.slane %v175, %v179
      %vm182 = vcmask 523264
      %v184 = vsel %vm182, %v166, 0
      %186 = vmatprep.subr.mxu0 0.0
      %187 = vmatpush1.msra.mxu0 0.0
      %188 = vmatprep.subr.mxu0 0.0
      %189 = vmatpush1.msra.mxu0 0.0
      %190 = vmatprep.subr.mxu0 0.0
      %191 = vmatpush1.msra.mxu0 0.0
      %192 = vmatprep.subr.mxu0 0.0
      %193 = vmatpush1.msra.mxu0 0.0
      %194 = vmatprep.subr.mxu0 0.0
      %195 = vmatpush1.msra.mxu0 0.0
      %196 = vmatprep.subr.mxu0 0.0
      %197 = vmatpush1.msra.mxu0 0.0
      %198 = vmatprep.subr.mxu0 0.0
      %199 = vmatpush1.msra.mxu0 0.0
      %200 = vmatprep.subr.mxu0 0.0
      %201 = vmatpush1.msra.mxu0 0.0
      %202 = vmatprep.subr.mxu0 0.0
      %203 = vmatpush1.msra.mxu0 %v174
      %204 = vmatprep.subr.mxu0 0.0
      %205 = vmatpush1.msra.mxu0 %v173
      %206 = vmatprep.subr.mxu0 0.0
      %207 = vmatpush1.msra.mxu0 %v172
      %208 = vmatprep.subr.mxu0 0.0
      %209 = vmatpush1.msra.mxu0 %v171
      %210 = vmatprep.subr.mxu0 0.0
      %211 = vmatpush1.msra.mxu0 %v170
      %212 = vmatprep.subr.mxu0 0.0
      %213 = vmatpush1.msra.mxu0 %v169
      %214 = vmatprep.subr.mxu0 0.0
      %215 = vmatpush1.msra.mxu0 %v168
      %216 = vmatprep.subr.mxu0 0.0
      %217 = vmatpush1.msra.mxu0 %v167
      %218 = vmatprep.subr.mxu0 0.0
      %219 = vmatpush2.msra.mxu0 0.0
      %220 = vmatprep.subr.mxu0 0.0
      %221 = vmatpush2.msra.mxu0 0.0
      %222 = vmatprep.subr.mxu0 0.0
      %223 = vmatpush2.msra.mxu0 0.0
      %224 = vmatprep.subr.mxu0 0.0
      %225 = vmatpush2.msra.mxu0 0.0
      %226 = vmatprep.subr.mxu0 0.0
      %227 = vmatpush2.msra.mxu0 0.0
      %228 = vmatprep.subr.mxu0 0.0
      %229 = vmatpush2.msra.mxu0 0.0
      %230 = vmatprep.subr.mxu0 0.0
      %231 = vmatpush2.msra.mxu0 0.0
      %232 = vmatprep.subr.mxu0 0.0
      %233 = vmatpush2.msra.mxu0 0.0
      %234 = vmatprep.subr.mxu0 0.0
      %235 = vmatpush2.msra.mxu0 0.0
      %236 = vmatprep.subr.mxu0 0.0
      %237 = vmatpush2.msra.mxu0 0.0
      %238 = vmatprep.subr.mxu0 0.0
      %239 = vmatpush2.msra.mxu0 0.0
      %240 = vmatprep.subr.mxu0 0.0
      %241 = vmatpush2.msra.mxu0 0.0
      %242 = vmatprep.subr.mxu0 0.0
      %243 = vmatpush2.msra.mxu0 0.0
      %244 = vmatprep.subr.mxu0 0.0
      %245 = vmatpush2.msra.mxu0 0.0
      %246 = vmatprep.subr.mxu0 0.0
      %247 = vmatpush2.msra.mxu0 0.0
      %248 = vmatprep.subr.mxu0 0.0
      %249 = vmatpush2.msra.mxu0 0.0
      %250 = vmatprep.mubr.f32.mxu0 0.0
      %251 = vmatmul.mubr.f32.gmra.mxu0 %v184
      %v252 = vpop.f32.mrf.mxu0
      %v253 = vadd.f32 %v180, %v252
      %v254 = vpop.f32.mrf.mxu0
      %255 = vdwg.mxu0
      %256 = vst [vmem:[%s165] sm:$0xff] %v253
      %p257 = scmp.lt.s32.totalorder %s14, 1
      %s258 = scalar_select %p257, %s14, 1
      %s259 = smul.addr %s258, 8
      %s260 = scalar_lea.vmem %s3, %s259
      // Predicated region
      $region33: #{conv_decoder_forward.3} parent=31 // pred_check
        %p261 = pneg %p100
      $region34: #{conv_decoder_forward.3} parent=31 // pred_check_branch
        %263 = sbr.rel (%p261) target = $region36
      $region35: #{conv_decoder_forward.3} parent=31 // pred_region
        _
      $region36: #{conv_decoder_forward.3} parent=31 // pred_fallthru
        _
    $region32: #{conv_decoder_forward.3} parent=5 // pred_fallthru
      _
    %p264 = scmp.le.s32.totalorder 2, %s9
    // Predicated region
    $region37: #{conv_decoder_forward.3} parent=5 // pred_check
      %p265 = pneg %p264
    $region38: #{conv_decoder_forward.3} parent=5 // pred_check_branch
      %267 = sbr.rel (%p265) target = $region40
    $region39: #{conv_decoder_forward.3} parent=5 // pred_region
      %s268 = ssub.s32 %s9, 2
      // Predicated region
      $region41: #{conv_decoder_forward.3} parent=39 // pred_check
        %p269 = pneg %p106
      $region42: #{conv_decoder_forward.3} parent=39 // pred_check_branch
        %271 = sbr.rel (%p269) target = $region44
      $region43: #{conv_decoder_forward.3} parent=39 // pred_region
        %p272 = scmp.lt.s32.totalorder %s15, 1
        %s273 = scalar_select %p272, %s15, 1
        %s274 = smul.addr %s273, 8
        %s275 = scalar_lea.vmem %s3, %s274
      $region44: #{conv_decoder_forward.3} parent=39 // pred_fallthru
        _
    $region40: #{conv_decoder_forward.3} parent=5 // pred_fallthru
      _
  $region6: #{conv_decoder_forward.3} parent=0 // loop_footer
    %s13 = sadd.s32 1, %s9
  $region7: #{conv_decoder_forward.3} parent=0 // loop_footer_branch
    %8 = sbr.rel target = $region3
  $region8: #{conv_decoder_forward.3} parent=0 // loop_exit
    _

// kernel: conv_decoder_forward.5
$region0: #{conv_decoder_forward.5}
  #allocation0 [shape = 'u32[]', space=smem, size = 0x4, offset = 0x4, fixed_abs, tag = 'smem constant byte address 0x4 - core index']
  #allocation1 [shape = 'u32[144,128]{1,0:T(1,128)}', space=vmem, size = 0x12000, scoped, tag = 'internal scratch']
  #allocation2 [shape = 'f32[19,104]{1,0:T(8,128)}', space=vmem, size = 0x3000, scoped, tag = 'scratch operand']
  %s0 = inlined_call_operand.vmem [shape: f32[2,17,96], index: 0, kind: input, shape index: {}]
  %s1 = inlined_call_operand.vmem [shape: f32[3,104,96], index: 1, kind: input, shape index: {}]
  %s2 = inlined_call_operand.vmem [shape: f32[1,96], index: 2, kind: input, shape index: {}]
  %s3 = inlined_call_operand.vmem [shape: f32[1,96], index: 3, kind: input, shape index: {}]
  %s4 = inlined_call_operand.vmem [shape: f32[2,17,96], index: 4, kind: output, shape index: {}]
  %s5 = sld [smem:[#allocation0]]
  $region49: #{conv_decoder_forward.5} parent=0
    _
  %s7 = ssub.s32 1, %s5
  %s8 = scalar_select 0, %s7, %s5
  loop: start=0, step=1, limit=4
  $region2: #{conv_decoder_forward.5} parent=0 // loop_pre_header
    _
  $region3: #{conv_decoder_forward.5} parent=0 // loop_header
    %s10 = sphi 0, %s14
    %p11 = scmp.ge.s32.totalorder %s10, 4
    %s20 = sphi 0, %s22
    %s23 = sphi 0, %s20
    %s24 = sphi 0, %s23
    %s40 = sphi 0, %s24
    %s44 = sphi 0, %s44
    %s46 = sphi 0, %s44
    %s47 = sphi 0, %s46
    %s61 = sphi 0, %s47
    %s65 = sphi 0, %s65
    %s67 = sphi 0, %s65
    %s68 = sphi 0, %s67
    %s82 = sphi 0, %s68
    %s86 = sphi 0, %s86
    %s88 = sphi 0, %s86
    %s89 = sphi 0, %s88
    %s103 = sphi 0, %s89
    %s109 = sphi 0, %s111
    %s112 = sphi 0, %s109
    %s113 = sphi 0, %s112
    %s129 = sphi 0, %s113
  $region4: #{conv_decoder_forward.5} parent=0 // loop_header_branch
    %13 = sbr.rel (%p11) target = $region8
  $region5: #{conv_decoder_forward.5} parent=0 // loop_body
    %s15 = ssub.s32 %s10, 1
    %s16 = ssub.s32 %s10, 2
    %s17 = sadd.s32 %s10, 1
    %s18 = ssub.s32 %s10, %s17
    %p19 = scmp.eq.s32.totalorder %s18, 0
    %s21 = sadd.s32 %s20, 1
    %s22 = scalar_select %p19, %s20, %s21
    %p25 = pneg %p19
    %p26 = scmp.eq.s32.totalorder %s10, 1
    %p27 = por %p25, %p26
    %p28 = scmp.ne.s32.totalorder %s20, %s23
    %p29 = scmp.eq.s32.totalorder %s10, 0
    %p30 = por %p28, %p29
    %p31 = scmp.ne.s32.totalorder %s20, %s23
    %p32 = scmp.eq.s32.totalorder %s15, 1
    %p33 = por %p31, %p32
    %p34 = scmp.ne.s32.totalorder %s23, %s24
    %p35 = scmp.eq.s32.totalorder %s15, 0
    %p36 = por %p34, %p35
    %p37 = scmp.ne.s32.totalorder %s23, %s24
    %p38 = scmp.eq.s32.totalorder %s16, 1
    %p39 = por %p37, %p38
    %p41 = scmp.ne.s32.totalorder %s24, %s40
    %p42 = scmp.eq.s32.totalorder %s16, 0
    %p43 = por %p41, %p42
    %s45 = sadd.s32 %s44, 1
    %p48 = scmp.eq.s32.totalorder %s10, 1
    %p49 = scmp.ne.s32.totalorder %s44, %s46
    %p50 = scmp.eq.s32.totalorder %s10, 0
    %p51 = por %p49, %p50
    %p52 = scmp.ne.s32.totalorder %s44, %s46
    %p53 = scmp.eq.s32.totalorder %s15, 1
    %p54 = por %p52, %p53
    %p55 = scmp.ne.s32.totalorder %s46, %s47
    %p56 = scmp.eq.s32.totalorder %s15, 0
    %p57 = por %p55, %p56
    %p58 = scmp.ne.s32.totalorder %s46, %s47
    %p59 = scmp.eq.s32.totalorder %s16, 1
    %p60 = por %p58, %p59
    %p62 = scmp.ne.s32.totalorder %s47, %s61
    %p63 = scmp.eq.s32.totalorder %s16, 0
    %p64 = por %p62, %p63
    %s66 = sadd.s32 %s65, 1
    %p69 = scmp.eq.s32.totalorder %s10, 1
    %p70 = scmp.ne.s32.totalorder %s65, %s67
    %p71 = scmp.eq.s32.totalorder %s10, 0
    %p72 = por %p70, %p71
    %p73 = scmp.ne.s32.totalorder %s65, %s67
    %p74 = scmp.eq.s32.totalorder %s15, 1
    %p75 = por %p73, %p74
    %p76 = scmp.ne.s32.totalorder %s67, %s68
    %p77 = scmp.eq.s32.totalorder %s15, 0
    %p78 = por %p76, %p77
    %p79 = scmp.ne.s32.totalorder %s67, %s68
    %p80 = scmp.eq.s32.totalorder %s16, 1
    %p81 = por %p79, %p80
    %p83 = scmp.ne.s32.totalorder %s68, %s82
    %p84 = scmp.eq.s32.totalorder %s16, 0
    %p85 = por %p83, %p84
    %s87 = sadd.s32 %s86, 1
    %p90 = scmp.eq.s32.totalorder %s10, 1
    %p91 = scmp.ne.s32.totalorder %s86, %s88
    %p92 = scmp.eq.s32.totalorder %s10, 0
    %p93 = por %p91, %p92
    %p94 = scmp.ne.s32.totalorder %s86, %s88
    %p95 = scmp.eq.s32.totalorder %s15, 1
    %p96 = por %p94, %p95
    %p97 = scmp.ne.s32.totalorder %s88, %s89
    %p98 = scmp.eq.s32.totalorder %s15, 0
    %p99 = por %p97, %p98
    %p100 = scmp.ne.s32.totalorder %s88, %s89
    %p101 = scmp.eq.s32.totalorder %s16, 1
    %p102 = por %p100, %p101
    %p104 = scmp.ne.s32.totalorder %s89, %s103
    %p105 = scmp.eq.s32.totalorder %s16, 0
    %p106 = por %p104, %p105
    %s107 = ssub.s32 %s10, %s17
    %p108 = scmp.eq.s32.totalorder %s107, 0
    %s110 = sadd.s32 %s109, 1
    %s111 = scalar_select %p108, %s109, %s110
    %p114 = pneg %p108
    %p115 = scmp.eq.s32.totalorder %s10, 1
    %p116 = por %p114, %p115
    %p117 = scmp.ne.s32.totalorder %s109, %s112
    %p118 = scmp.eq.s32.totalorder %s10, 0
    %p119 = por %p117, %p118
    %p120 = scmp.ne.s32.totalorder %s109, %s112
    %p121 = scmp.eq.s32.totalorder %s15, 1
    %p122 = por %p120, %p121
    %p123 = scmp.ne.s32.totalorder %s112, %s113
    %p124 = scmp.eq.s32.totalorder %s15, 0
    %p125 = por %p123, %p124
    %p126 = scmp.ne.s32.totalorder %s112, %s113
    %p127 = scmp.eq.s32.totalorder %s16, 1
    %p128 = por %p126, %p127
    %p130 = scmp.ne.s32.totalorder %s113, %s129
    %p131 = scmp.eq.s32.totalorder %s16, 0
    %p132 = por %p130, %p131
    %p133 = scmp.le.s32.totalorder 1, %s10
    %p134 = scmp.lt.s32.totalorder %s10, 3
    %p135 = pnand %p133, %p134
    %p136 = pneg %p135
    // Predicated region
    $region9: #{conv_decoder_forward.5} parent=5 // pred_check
      _
    $region10: #{conv_decoder_forward.5} parent=5 // pred_check_branch
      %138 = sbr.rel (%p135) target = $region12
    $region11: #{conv_decoder_forward.5} parent=5 // pred_region
      %s139 = ssub.s32 %s10, 1
      // Predicated region
      $region13: #{conv_decoder_forward.5} parent=11 // pred_check
        %p140 = pneg %p57
      $region14: #{conv_decoder_forward.5} parent=11 // pred_check_branch
        %142 = sbr.rel (%p140) target = $region16
      $region15: #{conv_decoder_forward.5} parent=11 // pred_region
        _
      $region16: #{conv_decoder_forward.5} parent=11 // pred_fallthru
        _
      // Predicated region
      $region17: #{conv_decoder_forward.5} parent=11 // pred_check
        %p143 = pneg %p78
      $region18: #{conv_decoder_forward.5} parent=11 // pred_check_branch
        %145 = sbr.rel (%p143) target = $region20
      $region19: #{conv_decoder_forward.5} parent=11 // pred_region
        _
      $region20: #{conv_decoder_forward.5} parent=11 // pred_fallthru
        _
      // Predicated region
      $region21: #{conv_decoder_forward.5} parent=11 // pred_check
        %p146 = pneg %p99
      $region22: #{conv_decoder_forward.5} parent=11 // pred_check_branch
        %148 = sbr.rel (%p146) target = $region24
      $region23: #{conv_decoder_forward.5} parent=11 // pred_region
        _
      $region24: #{conv_decoder_forward.5} parent=11 // pred_fallthru
        _
    $region12: #{conv_decoder_forward.5} parent=5 // pred_fallthru
      _
    %p149 = scmp.lt.s32.totalorder %s10, 2
    // Predicated region
    $region25: #{conv_decoder_forward.5} parent=5 // pred_check
      %p150 = pneg %p149
    $region26: #{conv_decoder_forward.5} parent=5 // pred_check_branch
      %152 = sbr.rel (%p150) target = $region28
    $region27: #{conv_decoder_forward.5} parent=5 // pred_region
      // Predicated region
      $region29: #{conv_decoder_forward.5} parent=27 // pred_check
        %p153 = pneg %p30
      $region30: #{conv_decoder_forward.5} parent=27 // pred_check_branch
        %155 = sbr.rel (%p153) target = $region32
      $region31: #{conv_decoder_forward.5} parent=27 // pred_region
        %p156 = scmp.lt.s32.totalorder %s10, 1
        %s157 = scalar_select %p156, %s10, 1
        %s158 = smul.addr %s157, 3
        %s159 = smul.addr %s158, 8
        %s160 = scalar_lea.vmem %s0, %s159
      $region32: #{conv_decoder_forward.5} parent=27 // pred_fallthru
        _
    $region28: #{conv_decoder_forward.5} parent=5 // pred_fallthru
      _
    %p161 = scmp.le.s32.totalorder 1, %s10
    %p162 = scmp.lt.s32.totalorder %s10, 3
    %p163 = pnand %p161, %p162
    %p164 = pneg %p163
    // Predicated region
    $region33: #{conv_decoder_forward.5} parent=5 // pred_check
      _
    $region34: #{conv_decoder_forward.5} parent=5 // pred_check_branch
      %166 = sbr.rel (%p163) target = $region36
    $region35: #{conv_decoder_forward.5} parent=5 // pred_region
      %s167 = ssub.s32 %s10, 1
      %p168 = scmp.lt.s32.totalorder %s15, 1
      %s169 = scalar_select %p168, %s15, 1
      %s170 = smul.addr %s169, 3
      %s171 = smul.addr %s170, 8
      %s172 = scalar_lea.vmem %s0, %s171
      %p173 = pneg %p36
      %p174 = pneg %p33
      %p175 = pneg %p57
      %p176 = pneg %p54
      %p177 = pneg %p78
      %p178 = pneg %p75
      %p179 = pneg %p99
      %p180 = pneg %p96
      %p181 = pneg %p125
      %p182 = pneg %p122
      %p183 = scmp.lt.s32.totalorder %s15, 1
      %s184 = scalar_select %p183, %s15, 1
      %s185 = smul.addr %s184, 3
      %s186 = smul.addr %s185, 8
      %s187 = scalar_lea.vmem %s4, %s186
      %p188 = scmp.lt.s32.totalorder %s15, 1
      %s189 = scalar_select %p188, %s15, 1
      %s190 = smul.addr %s189, 3
      %s191 = smul.addr %s190, 8
      %s192 = scalar_lea.vmem %s0, %s191
      %p193 = scmp.lt.s32.totalorder %s15, 1
      %s194 = scalar_select %p193, %s15, 1
      %s195 = smul.addr %s194, 3
      %s196 = smul.addr %s195, 8
      %s197 = scalar_lea.vmem %s4, %s196
      %vm198 = vcmask 850944
      %199 = vst.msk [vmem:[#allocation2] sm:$0xff] %vm198, 0.0
      %200 = vst.msk [vmem:[#allocation2 + $0x8] sm:$0xff] %vm198, 0.0
      %vm201 = vcmask 845824
      %202 = vst.msk [vmem:[#allocation2 + $0x10] sm:$0x7] %vm201, 0.0
      %v203 = vld [vmem:[%s192] sm:$0xff]
      %v204 = vld [vmem:[%s192 + $0x8] sm:$0xff]
      %v205 = vld [vmem:[%s192 + $0x10] sm:$0x1]
      %209 = vrot.lane.b32.xlu0 %v203, 4
      %v210 = vpop.permute.xlu0 %209
      %211 = vrot.lane.b32.xlu0 %v204, 4
      %v212 = vpop.permute.xlu0 %211
      %213 = vrot.lane.b32.xlu0 %v205, 4
      %v214 = vpop.permute.xlu0 %213
      %vm218 = vcmask 818208
      %219 = vst.msk [vmem:[#allocation2 + $0x1] sm:$0xff] %vm218, %v210
      %220 = vst.msk [vmem:[#allocation2 + $0x9] sm:$0xff] %vm218, %v212
      %vm221 = vcmask 811040
      %222 = vst.msk [vmem:[#allocation2 + $0x11] sm:$0x1] %vm221, %v214
      %v223 = vld [vmem:[#allocation2] sm:$0xff]
      %v224 = vld [vmem:[#allocation2 + $0x8] sm:$0xff]
      %v225 = vld [vmem:[#allocation2 + $0x10] sm:$0x1]
      %v226 = vld [vmem:[%s1] sm:$0xff]
      %v227 = vld [vmem:[%s1 + $0x8] sm:$0xff]
      %v228 = vld [vmem:[%s1 + $0x10] sm:$0xff]
      %v229 = vld [vmem:[%s1 + $0x18] sm:$0xff]
      %v230 = vld [vmem:[%s1 + $0x20] sm:$0xff]
      %v231 = vld [vmem:[%s1 + $0x28] sm:$0xff]
      %v232 = vld [vmem:[%s1 + $0x30] sm:$0xff]
      %v233 = vld [vmem:[%s1 + $0x38] sm:$0xff]
      %v234 = vld [vmem:[%s1 + $0x40] sm:$0xff]
      %v235 = vld [vmem:[%s1 + $0x48] sm:$0xff]
      %v236 = vld [vmem:[%s1 + $0x50] sm:$0xff]
      %v237 = vld [vmem:[%s1 + $0x58] sm:$0xff]
      %v238 = vld [vmem:[%s1 + $0x60] sm:$0xff]
      %v239 = vld [vmem:[#allocation2 + $0x1] sm:$0xff]
      %v240 = vld [vmem:[#allocation2 + $0x9] sm:$0xff]
      %v241 = vld [vmem:[#allocation2 + $0x11] sm:$0x1]
      %s242 = scalar_lea.vmem %s1, 104
      %v243 = vld [vmem:[%s242] sm:$0xff]
      %v244 = vld [vmem:[%s242 + $0x8] sm:$0xff]
      %v245 = vld [vmem:[%s242 + $0x10] sm:$0xff]
      %v246 = vld [vmem:[%s242 + $0x18] sm:$0xff]
      %v247 = vld [vmem:[%s242 + $0x20] sm:$0xff]
      %v248 = vld [vmem:[%s242 + $0x28] sm:$0xff]
      %v249 = vld [vmem:[%s242 + $0x30] sm:$0xff]
      %v250 = vld [vmem:[%s242 + $0x38] sm:$0xff]
      %v251 = vld [vmem:[%s242 + $0x40] sm:$0xff]
      %v252 = vld [vmem:[%s242 + $0x48] sm:$0xff]
      %v253 = vld [vmem:[%s242 + $0x50] sm:$0xff]
      %v254 = vld [vmem:[%s242 + $0x58] sm:$0xff]
      %v255 = vld [vmem:[%s242 + $0x60] sm:$0xff]
      %v257 = vsel %vm198, %v239, 0
      %v260 = vsel %vm198, %v240, 0
      %v263 = vsel %vm198, %v241, 0
      %265 = vmatprep.subr.mxu0 0.0
      %266 = vmatpush1.msra.mxu0 0.0
      %267 = vmatprep.subr.mxu0 0.0
      %268 = vmatpush1.msra.mxu0 0.0
      %269 = vmatprep.subr.mxu0 0.0
      %270 = vmatpush1.msra.mxu0 0.0
      %271 = vmatprep.subr.mxu0 0.0
      %272 = vmatpush1.msra.mxu0 %v255
      %273 = vmatprep.subr.mxu0 0.0
      %274 = vmatpush1.msra.mxu0 %v254
      %275 = vmatprep.subr.mxu0 0.0
      %276 = vmatpush1.msra.mxu0 %v253
      %277 = vmatprep.subr.mxu0 0.0
      %278 = vmatpush1.msra.mxu0 %v252
      %279 = vmatprep.subr.mxu0 0.0
      %280 = vmatpush1.msra.mxu0 %v251
      %281 = vmatprep.subr.mxu0 0.0
      %282 = vmatpush1.msra.mxu0 %v250
      %283 = vmatprep.subr.mxu0 0.0
      %284 = vmatpush1.msra.mxu0 %v249
      %285 = vmatprep.subr.mxu0 0.0
      %286 = vmatpush1.msra.mxu0 %v248
      %287 = vmatprep.subr.mxu0 0.0
      %288 = vmatpush1.msra.mxu0 %v247
      %289 = vmatprep.subr.mxu0 0.0
      %290 = vmatpush1.msra.mxu0 %v246
      %291 = vmatprep.subr.mxu0 0.0
      %292 = vmatpush1.msra.mxu0 %v245
      %293 = vmatprep.subr.mxu0 0.0
      %294 = vmatpush1.msra.mxu0 %v244
      %295 = vmatprep.subr.mxu0 0.0
      %296 = vmatpush1.msra.mxu0 %v243
      %297 = vmatprep.subr.mxu0 0.0
      %298 = vmatpush2.msra.mxu0 0.0
      %299 = vmatprep.subr.mxu0 0.0
      %300 = vmatpush2.msra.mxu0 0.0
      %301 = vmatprep.subr.mxu0 0.0
      %302 = vmatpush2.msra.mxu0 0.0
      %303 = vmatprep.subr.mxu0 0.0
      %304 = vmatpush2.msra.mxu0 0.0
      %305 = vmatprep.subr.mxu0 0.0
      %306 = vmatpush2.msra.mxu0 0.0
      %307 = vmatprep.subr.mxu0 0.0
      %308 = vmatpush2.msra.mxu0 0.0
      %309 = vmatprep.subr.mxu0 0.0
      %310 = vmatpush2.msra.mxu0 0.0
      %311 = vmatprep.subr.mxu0 0.0
      %312 = vmatpush2.msra.mxu0 0.0
      %313 = vmatprep.subr.mxu0 0.0
      %314 = vmatpush2.msra.mxu0 0.0
      %315 = vmatprep.subr.mxu0 0.0
      %316 = vmatpush2.msra.mxu0 0.0
      %317 = vmatprep.subr.mxu0 0.0
      %318 = vmatpush2.msra.mxu0 0.0
      %319 = vmatprep.subr.mxu0 0.0
      %320 = vmatpush2.msra.mxu0 0.0
      %321 = vmatprep.subr.mxu0 0.0
      %322 = vmatpush2.msra.mxu0 0.0
      %323 = vmatprep.subr.mxu0 0.0
      %324 = vmatpush2.msra.mxu0 0.0
      %325 = vmatprep.subr.mxu0 0.0
      %326 = vmatpush2.msra.mxu0 0.0
      %327 = vmatprep.subr.mxu0 0.0
      %328 = vmatpush2.msra.mxu0 0.0
      %329 = vmatprep.mubr.f32.mxu0 0.0
      %330 = vmatmul.mubr.f32.gmra.mxu0 %v257
      %v331 = vpop.f32.mrf.mxu0
      %v332 = vadd.f32 0.0, %v331
      %v333 = vpop.f32.mrf.mxu0
      %334 = vmatprep.mubr.f32.mxu0 0.0
      %335 = vmatmul.mubr.f32.gmra.mxu0 %v260
      %v336 = vpop.f32.mrf.mxu0
      %v337 = vadd.f32 0.0, %v336
      %v338 = vpop.f32.mrf.mxu0
      %339 = vmatprep.mubr.f32.mxu0 0.0
      %340 = vmatmul.mubr.f32.gmra.mxu0 %v263
      %v341 = vpop.f32.mrf.mxu0
      %v342 = vadd.f32 0.0, %v341
      %v343 = vpop.f32.mrf.mxu0
      %344 = vdwg.mxu0
      %v346 = vsel %vm198, %v223, 0
      %v349 = vsel %vm198, %v224, 0
      %v352 = vsel %vm198, %v225, 0
      %354 = vmatprep.subr.mxu0 0.0
      %355 = vmatpush1.msra.mxu0 0.0
      %356 = vmatprep.subr.mxu0 0.0
      %357 = vmatpush1.msra.mxu0 0.0
      %358 = vmatprep.subr.mxu0 0.0
      %359 = vmatpush1.msra.mxu0 0.0
      %360 = vmatprep.subr.mxu0 0.0
      %361 = vmatpush1.msra.mxu0 %v238
      %362 = vmatprep.subr.mxu0 0.0
      %363 = vmatpush1.msra.mxu0 %v237
      %364 = vmatprep.subr.mxu0 0.0
      %365 = vmatpush1.msra.mxu0 %v236
      %366 = vmatprep.subr.mxu0 0.0
      %367 = vmatpush1.msra.mxu0 %v235
      %368 = vmatprep.subr.mxu0 0.0
      %369 = vmatpush1.msra.mxu0 %v234
      %370 = vmatprep.subr.mxu0 0.0
      %371 = vmatpush1.msra.mxu0 %v233
      %372 = vmatprep.subr.mxu0 0.0
      %373 = vmatpush1.msra.mxu0 %v232
      %374 = vmatprep.subr.mxu0 0.0
      %375 = vmatpush1.msra.mxu0 %v231
      %376 = vmatprep.subr.mxu0 0.0
      %377 = vmatpush1.msra.mxu0 %v230
      %378 = vmatprep.subr.mxu0 0.0
      %379 = vmatpush1.msra.mxu0 %v229
      %380 = vmatprep.subr.mxu0 0.0
      %381 = vmatpush1.msra.mxu0 %v228
      %382 = vmatprep.subr.mxu0 0.0
      %383 = vmatpush1.msra.mxu0 %v227
      %384 = vmatprep.subr.mxu0 0.0
      %385 = vmatpush1.msra.mxu0 %v226
      %386 = vmatprep.subr.mxu0 0.0
      %387 = vmatpush2.msra.mxu0 0.0
      %388 = vmatprep.subr.mxu0 0.0
      %389 = vmatpush2.msra.mxu0 0.0
      %390 = vmatprep.subr.mxu0 0.0
      %391 = vmatpush2.msra.mxu0 0.0
      %392 = vmatprep.subr.mxu0 0.0
      %393 = vmatpush2.msra.mxu0 0.0
      %394 = vmatprep.subr.mxu0 0.0
      %395 = vmatpush2.msra.mxu0 0.0
      %396 = vmatprep.subr.mxu0 0.0
      %397 = vmatpush2.msra.mxu0 0.0
      %398 = vmatprep.subr.mxu0 0.0
      %399 = vmatpush2.msra.mxu0 0.0
      %400 = vmatprep.subr.mxu0 0.0
      %401 = vmatpush2.msra.mxu0 0.0
      %402 = vmatprep.subr.mxu0 0.0
      %403 = vmatpush2.msra.mxu0 0.0
      %404 = vmatprep.subr.mxu0 0.0
      %405 = vmatpush2.msra.mxu0 0.0
      %406 = vmatprep.subr.mxu0 0.0
      %407 = vmatpush2.msra.mxu0 0.0
      %408 = vmatprep.subr.mxu0 0.0
      %409 = vmatpush2.msra.mxu0 0.0
      %410 = vmatprep.subr.mxu0 0.0
      %411 = vmatpush2.msra.mxu0 0.0
      %412 = vmatprep.subr.mxu0 0.0
      %413 = vmatpush2.msra.mxu0 0.0
      %414 = vmatprep.subr.mxu0 0.0
      %415 = vmatpush2.msra.mxu0 0.0
      %416 = vmatprep.subr.mxu0 0.0
      %417 = vmatpush2.msra.mxu0 0.0
      %418 = vmatprep.mubr.f32.mxu0 0.0
      %419 = vmatmul.mubr.f32.gmra.mxu0 %v346
      %v420 = vpop.f32.mrf.mxu0
      %v421 = vadd.f32 %v332, %v420
      %v422 = vpop.f32.mrf.mxu0
      %423 = vmatprep.mubr.f32.mxu0 0.0
      %424 = vmatmul.mubr.f32.gmra.mxu0 %v349
      %v425 = vpop.f32.mrf.mxu0
      %v426 = vadd.f32 %v337, %v425
      %v427 = vpop.f32.mrf.mxu0
      %428 = vmatprep.mubr.f32.mxu0 0.0
      %429 = vmatmul.mubr.f32.gmra.mxu0 %v352
      %v430 = vpop.f32.mrf.mxu0
      %v431 = vadd.f32 %v342, %v430
      %v432 = vpop.f32.mrf.mxu0
      %433 = vdwg.mxu0
      %v434 = vld [vmem:[#allocation2 + $0x2] sm:$0xff]
      %v435 = vld [vmem:[#allocation2 + $0xa] sm:$0xff]
      %v436 = vld [vmem:[#allocation2 + $0x12] sm:$0x1]
      %s437 = scalar_lea.vmem %s1, 208
      %v438 = vld [vmem:[%s437] sm:$0xff]
      %v439 = vld [vmem:[%s437 + $0x8] sm:$0xff]
      %v440 = vld [vmem:[%s437 + $0x10] sm:$0xff]
      %v441 = vld [vmem:[%s437 + $0x18] sm:$0xff]
      %v442 = vld [vmem:[%s437 + $0x20] sm:$0xff]
      %v443 = vld [vmem:[%s437 + $0x28] sm:$0xff]
      %v444 = vld [vmem:[%s437 + $0x30] sm:$0xff]
      %v445 = vld [vmem:[%s437 + $0x38] sm:$0xff]
      %v446 = vld [vmem:[%s437 + $0x40] sm:$0xff]
      %v447 = vld [vmem:[%s437 + $0x48] sm:$0xff]
      %v448 = vld [vmem:[%s437 + $0x50] sm:$0xff]
      %v449 = vld [vmem:[%s437 + $0x58] sm:$0xff]
      %v450 = vld [vmem:[%s437 + $0x60] sm:$0xff]
      %v452 = vsel %vm198, %v434, 0
      %v455 = vsel %vm198, %v435, 0
      %v458 = vsel %vm198, %v436, 0
      %460 = vmatprep.subr.mxu0 0.0
      %461 = vmatpush1.msra.mxu0 0.0
      %462 = vmatprep.subr.mxu0 0.0
      %463 = vmatpush1.msra.mxu0 0.0
      %464 = vmatprep.subr.mxu0 0.0
      %465 = vmatpush1.msra.mxu0 0.0
      %466 = vmatprep.subr.mxu0 0.0
      %467 = vmatpush1.msra.mxu0 %v450
      %468 = vmatprep.subr.mxu0 0.0
      %469 = vmatpush1.msra.mxu0 %v449
      %470 = vmatprep.subr.mxu0 0.0
      %471 = vmatpush1.msra.mxu0 %v448
      %472 = vmatprep.subr.mxu0 0.0
      %473 = vmatpush1.msra.mxu0 %v447
      %474 = vmatprep.subr.mxu0 0.0
      %475 = vmatpush1.msra.mxu0 %v446
      %476 = vmatprep.subr.mxu0 0.0
      %477 = vmatpush1.msra.mxu0 %v445
      %478 = vmatprep.subr.mxu0 0.0
      %479 = vmatpush1.msra.mxu0 %v444
      %480 = vmatprep.subr.mxu0 0.0
      %481 = vmatpush1.msra.mxu0 %v443
      %482 = vmatprep.subr.mxu0 0.0
      %483 = vmatpush1.msra.mxu0 %v442
      %484 = vmatprep.subr.mxu0 0.0
      %485 = vmatpush1.msra.mxu0 %v441
      %486 = vmatprep.subr.mxu0 0.0
      %487 = vmatpush1.msra.mxu0 %v440
      %488 = vmatprep.subr.mxu0 0.0
      %489 = vmatpush1.msra.mxu0 %v439
      %490 = vmatprep.subr.mxu0 0.0
      %491 = vmatpush1.msra.mxu0 %v438
      %492 = vmatprep.subr.mxu0 0.0
      %493 = vmatpush2.msra.mxu0 0.0
      %494 = vmatprep.subr.mxu0 0.0
      %495 = vmatpush2.msra.mxu0 0.0
      %496 = vmatprep.subr.mxu0 0.0
      %497 = vmatpush2.msra.mxu0 0.0
      %498 = vmatprep.subr.mxu0 0.0
      %499 = vmatpush2.msra.mxu0 0.0
      %500 = vmatprep.subr.mxu0 0.0
      %501 = vmatpush2.msra.mxu0 0.0
      %502 = vmatprep.subr.mxu0 0.0
      %503 = vmatpush2.msra.mxu0 0.0
      %504 = vmatprep.subr.mxu0 0.0
      %505 = vmatpush2.msra.mxu0 0.0
      %506 = vmatprep.subr.mxu0 0.0
      %507 = vmatpush2.msra.mxu0 0.0
      %508 = vmatprep.subr.mxu0 0.0
      %509 = vmatpush2.msra.mxu0 0.0
      %510 = vmatprep.subr.mxu0 0.0
      %511 = vmatpush2.msra.mxu0 0.0
      %512 = vmatprep.subr.mxu0 0.0
      %513 = vmatpush2.msra.mxu0 0.0
      %514 = vmatprep.subr.mxu0 0.0
      %515 = vmatpush2.msra.mxu0 0.0
      %516 = vmatprep.subr.mxu0 0.0
      %517 = vmatpush2.msra.mxu0 0.0
      %518 = vmatprep.subr.mxu0 0.0
      %519 = vmatpush2.msra.mxu0 0.0
      %520 = vmatprep.subr.mxu0 0.0
      %521 = vmatpush2.msra.mxu0 0.0
      %522 = vmatprep.subr.mxu0 0.0
      %523 = vmatpush2.msra.mxu0 0.0
      %524 = vmatprep.mubr.f32.mxu0 0.0
      %525 = vmatmul.mubr.f32.gmra.mxu0 %v452
      %v526 = vpop.f32.mrf.mxu0
      %v527 = vadd.f32 0.0, %v526
      %v528 = vpop.f32.mrf.mxu0
      %529 = vmatprep.mubr.f32.mxu0 0.0
      %530 = vmatmul.mubr.f32.gmra.mxu0 %v455
      %v531 = vpop.f32.mrf.mxu0
      %v532 = vadd.f32 0.0, %v531
      %v533 = vpop.f32.mrf.mxu0
      %534 = vmatprep.mubr.f32.mxu0 0.0
      %535 = vmatmul.mubr.f32.gmra.mxu0 %v458
      %v536 = vpop.f32.mrf.mxu0
      %v537 = vadd.f32 0.0, %v536
      %v538 = vpop.f32.mrf.mxu0
      %539 = vdwg.mxu0
      %v540 = vadd.f32 %v421, %v527
      %v541 = vadd.f32 %v426, %v532
      %v542 = vadd.f32 %v431, %v537
      %v543 = vld [vmem:[%s2] sm:$0x1]
      %v545 = vlaneseq
      %v546 = vshrl.u32 %v545, 7
      %v547 = vsub.s32 0, %v546
      %v548 = vrot.slane %v543, %v547
      %v550 = vmul.f32 %v540, %v548
      %v551 = vmul.f32 %v541, %v548
      %v552 = vmul.f32 %v542, %v548
      %v553 = vld [vmem:[%s3] sm:$0x1]
      %v555 = vlaneseq
      %v556 = vshrl.u32 %v555, 7
      %v557 = vsub.s32 0, %v556
      %v558 = vrot.slane %v553, %v557
      %v560 = vadd.f32 %v550, %v558
      %v561 = vadd.f32 %v551, %v558
      %v562 = vadd.f32 %v552, %v558
      %vm563 = vcmp.ge.f32.partialorder %v560, 0.0
      %vm564 = vcmp.ge.f32.partialorder %v561, 0.0
      %vm565 = vcmp.ge.f32.partialorder %v562, 0.0
      %v566 = vmul.f32 %v560, 0.01
      %v567 = vmul.f32 %v561, 0.01
      %v568 = vmul.f32 %v562, 0.01
      %v569 = vsel %vm563, %v560, %v566
      %v570 = vsel %vm564, %v561, %v567
      %v571 = vsel %vm565, %v562, %v568
      %vm572 = vcmask 785408
      %573 = vst.msk [vmem:[%s197] sm:$0xff] %vm572, %v569
      %574 = vst.msk [vmem:[%s197 + $0x8] sm:$0xff] %vm572, %v570
      %vm575 = vcmask 778240
      %576 = vst.msk [vmem:[%s197 + $0x10] sm:$0x1] %vm575, %v571
      %p577 = scmp.lt.s32.totalorder %s15, 1
      %s578 = scalar_select %p577, %s15, 1
      %s579 = smul.addr %s578, 3
      %s580 = smul.addr %s579, 8
      %s581 = scalar_lea.vmem %s4, %s580
      // Predicated region
      $region37: #{conv_decoder_forward.5} parent=35 // pred_check
        %p582 = pneg %p122
      $region38: #{conv_decoder_forward.5} parent=35 // pred_check_branch
        %584 = sbr.rel (%p582) target = $region40
      $region39: #{conv_decoder_forward.5} parent=35 // pred_region
        _
      $region40: #{conv_decoder_forward.5} parent=35 // pred_fallthru
        _
    $region36: #{conv_decoder_forward.5} parent=5 // pred_fallthru
      _
    %p585 = scmp.le.s32.totalorder 2, %s10
    // Predicated region
    $region41: #{conv_decoder_forward.5} parent=5 // pred_check
      %p586 = pneg %p585
    $region42: #{conv_decoder_forward.5} parent=5 // pred_check_branch
      %588 = sbr.rel (%p586) target = $region44
    $region43: #{conv_decoder_forward.5} parent=5 // pred_region
      %s589 = ssub.s32 %s10, 2
      // Predicated region
      $region45: #{conv_decoder_forward.5} parent=43 // pred_check
        %p590 = pneg %p128
      $region46: #{conv_decoder_forward.5} parent=43 // pred_check_branch
        %592 = sbr.rel (%p590) target = $region48
      $region47: #{conv_decoder_forward.5} parent=43 // pred_region
        %p593 = scmp.lt.s32.totalorder %s16, 1
        %s594 = scalar_select %p593, %s16, 1
        %s595 = smul.addr %s594, 3
        %s596 = smul.addr %s595, 8
        %s597 = scalar_lea.vmem %s4, %s596
      $region48: #{conv_decoder_forward.5} parent=43 // pred_fallthru
        _
    $region44: #{conv_decoder_forward.5} parent=5 // pred_fallthru
      _
  $region6: #{conv_decoder_forward.5} parent=0 // loop_footer
    %s14 = sadd.s32 1, %s10
  $region7: #{conv_decoder_forward.5} parent=0 // loop_footer_branch
    %9 = sbr.rel target = $region3
  $region8: #{conv_decoder_forward.5} parent=0 // loop_exit
    _

// kernel: conv_decoder_forward.4
$region0: #{conv_decoder_forward.4}
  #allocation0 [shape = 'u32[]', space=smem, size = 0x4, offset = 0x4, fixed_abs, tag = 'smem constant byte address 0x4 - core index']
  #allocation1 [shape = 'u32[144,128]{1,0:T(1,128)}', space=vmem, size = 0x12000, scoped, tag = 'internal scratch']
  #allocation2 [shape = 'f32[19,104]{1,0:T(8,128)}', space=vmem, size = 0x3000, scoped, tag = 'scratch operand']
  #allocation3 [shape = 'f32[19,104]{1,0:T(8,128)}', space=vmem, size = 0x3000, scoped, tag = 'scratch operand']
  %s0 = inlined_call_operand.vmem [shape: f32[2,16,64], index: 0, kind: input, shape index: {}]
  %s1 = inlined_call_operand.vmem [shape: f32[2,17,96], index: 1, kind: input, shape index: {}]
  %s2 = inlined_call_operand.vmem [shape: f32[3,104,96], index: 2, kind: input, shape index: {}]
  %s3 = inlined_call_operand.vmem [shape: f32[3,104,96], index: 3, kind: input, shape index: {}]
  %s4 = inlined_call_operand.vmem [shape: f32[1,96], index: 4, kind: input, shape index: {}]
  %s5 = inlined_call_operand.vmem [shape: f32[1,96], index: 5, kind: input, shape index: {}]
  %s6 = inlined_call_operand.vmem [shape: f32[2,17,96], index: 6, kind: output, shape index: {}]
  %s7 = sld [smem:[#allocation0]]
  $region57: #{conv_decoder_forward.4} parent=0
    _
  %s9 = ssub.s32 1, %s7
  %s10 = scalar_select 0, %s9, %s7
  loop: start=0, step=1, limit=4
  $region2: #{conv_decoder_forward.4} parent=0 // loop_pre_header
    _
  $region3: #{conv_decoder_forward.4} parent=0 // loop_header
    %s12 = sphi 0, %s16
    %p13 = scmp.ge.s32.totalorder %s12, 4
    %s22 = sphi 0, %s24
    %s25 = sphi 0, %s22
    %s26 = sphi 0, %s25
    %s42 = sphi 0, %s26
    %s48 = sphi 0, %s50
    %s51 = sphi 0, %s48
    %s52 = sphi 0, %s51
    %s68 = sphi 0, %s52
    %s72 = sphi 0, %s72
    %s74 = sphi 0, %s72
    %s75 = sphi 0, %s74
    %s89 = sphi 0, %s75
    %s93 = sphi 0, %s93
    %s95 = sphi 0, %s93
    %s96 = sphi 0, %s95
    %s110 = sphi 0, %s96
    %s114 = sphi 0, %s114
    %s116 = sphi 0, %s114
    %s117 = sphi 0, %s116
    %s131 = sphi 0, %s117
    %s135 = sphi 0, %s135
    %s137 = sphi 0, %s135
    %s138 = sphi 0, %s137
    %s152 = sphi 0, %s138
    %s158 = sphi 0, %s160
    %s161 = sphi 0, %s158
    %s162 = sphi 0, %s161
    %s178 = sphi 0, %s162
  $region4: #{conv_decoder_forward.4} parent=0 // loop_header_branch
    %15 = sbr.rel (%p13) target = $region8
  $region5: #{conv_decoder_forward.4} parent=0 // loop_body
    %s17 = ssub.s32 %s12, 1
    %s18 = ssub.s32 %s12, 2
    %s19 = sadd.s32 %s12, 1
    %s20 = ssub.s32 %s12, %s19
    %p21 = scmp.eq.s32.totalorder %s20, 0
    %s23 = sadd.s32 %s22, 1
    %s24 = scalar_select %p21, %s22, %s23
    %p27 = pneg %p21
    %p28 = scmp.eq.s32.totalorder %s12, 1
    %p29 = por %p27, %p28
    %p30 = scmp.ne.s32.totalorder %s22, %s25
    %p31 = scmp.eq.s32.totalorder %s12, 0
    %p32 = por %p30, %p31
    %p33 = scmp.ne.s32.totalorder %s22, %s25
    %p34 = scmp.eq.s32.totalorder %s17, 1
    %p35 = por %p33, %p34
    %p36 = scmp.ne.s32.totalorder %s25, %s26
    %p37 = scmp.eq.s32.totalorder %s17, 0
    %p38 = por %p36, %p37
    %p39 = scmp.ne.s32.totalorder %s25, %s26
    %p40 = scmp.eq.s32.totalorder %s18, 1
    %p41 = por %p39, %p40
    %p43 = scmp.ne.s32.totalorder %s26, %s42
    %p44 = scmp.eq.s32.totalorder %s18, 0
    %p45 = por %p43, %p44
    %s46 = ssub.s32 %s12, %s19
    %p47 = scmp.eq.s32.totalorder %s46, 0
    %s49 = sadd.s32 %s48, 1
    %s50 = scalar_select %p47, %s48, %s49
    %p53 = pneg %p47
    %p54 = scmp.eq.s32.totalorder %s12, 1
    %p55 = por %p53, %p54
    %p56 = scmp.ne.s32.totalorder %s48, %s51
    %p57 = scmp.eq.s32.totalorder %s12, 0
    %p58 = por %p56, %p57
    %p59 = scmp.ne.s32.totalorder %s48, %s51
    %p60 = scmp.eq.s32.totalorder %s17, 1
    %p61 = por %p59, %p60
    %p62 = scmp.ne.s32.totalorder %s51, %s52
    %p63 = scmp.eq.s32.totalorder %s17, 0
    %p64 = por %p62, %p63
    %p65 = scmp.ne.s32.totalorder %s51, %s52
    %p66 = scmp.eq.s32.totalorder %s18, 1
    %p67 = por %p65, %p66
    %p69 = scmp.ne.s32.totalorder %s52, %s68
    %p70 = scmp.eq.s32.totalorder %s18, 0
    %p71 = por %p69, %p70
    %s73 = sadd.s32 %s72, 1
    %p76 = scmp.eq.s32.totalorder %s12, 1
    %p77 = scmp.ne.s32.totalorder %s72, %s74
    %p78 = scmp.eq.s32.totalorder %s12, 0
    %p79 = por %p77, %p78
    %p80 = scmp.ne.s32.totalorder %s72, %s74
    %p81 = scmp.eq.s32.totalorder %s17, 1
    %p82 = por %p80, %p81
    %p83 = scmp.ne.s32.totalorder %s74, %s75
    %p84 = scmp.eq.s32.totalorder %s17, 0
    %p85 = por %p83, %p84
    %p86 = scmp.ne.s32.totalorder %s74, %s75
    %p87 = scmp.eq.s32.totalorder %s18, 1
    %p88 = por %p86, %p87
    %p90 = scmp.ne.s32.totalorder %s75, %s89
    %p91 = scmp.eq.s32.totalorder %s18, 0
    %p92 = por %p90, %p91
    %s94 = sadd.s32 %s93, 1
    %p97 = scmp.eq.s32.totalorder %s12, 1
    %p98 = scmp.ne.s32.totalorder %s93, %s95
    %p99 = scmp.eq.s32.totalorder %s12, 0
    %p100 = por %p98, %p99
    %p101 = scmp.ne.s32.totalorder %s93, %s95
    %p102 = scmp.eq.s32.totalorder %s17, 1
    %p103 = por %p101, %p102
    %p104 = scmp.ne.s32.totalorder %s95, %s96
    %p105 = scmp.eq.s32.totalorder %s17, 0
    %p106 = por %p104, %p105
    %p107 = scmp.ne.s32.totalorder %s95, %s96
    %p108 = scmp.eq.s32.totalorder %s18, 1
    %p109 = por %p107, %p108
    %p111 = scmp.ne.s32.totalorder %s96, %s110
    %p112 = scmp.eq.s32.totalorder %s18, 0
    %p113 = por %p111, %p112
    %s115 = sadd.s32 %s114, 1
    %p118 = scmp.eq.s32.totalorder %s12, 1
    %p119 = scmp.ne.s32.totalorder %s114, %s116
    %p120 = scmp.eq.s32.totalorder %s12, 0
    %p121 = por %p119, %p120
    %p122 = scmp.ne.s32.totalorder %s114, %s116
    %p123 = scmp.eq.s32.totalorder %s17, 1
    %p124 = por %p122, %p123
    %p125 = scmp.ne.s32.totalorder %s116, %s117
    %p126 = scmp.eq.s32.totalorder %s17, 0
    %p127 = por %p125, %p126
    %p128 = scmp.ne.s32.totalorder %s116, %s117
    %p129 = scmp.eq.s32.totalorder %s18, 1
    %p130 = por %p128, %p129
    %p132 = scmp.ne.s32.totalorder %s117, %s131
    %p133 = scmp.eq.s32.totalorder %s18, 0
    %p134 = por %p132, %p133
    %s136 = sadd.s32 %s135, 1
    %p139 = scmp.eq.s32.totalorder %s12, 1
    %p140 = scmp.ne.s32.totalorder %s135, %s137
    %p141 = scmp.eq.s32.totalorder %s12, 0
    %p142 = por %p140, %p141
    %p143 = scmp.ne.s32.totalorder %s135, %s137
    %p144 = scmp.eq.s32.totalorder %s17, 1
    %p145 = por %p143, %p144
    %p146 = scmp.ne.s32.totalorder %s137, %s138
    %p147 = scmp.eq.s32.totalorder %s17, 0
    %p148 = por %p146, %p147
    %p149 = scmp.ne.s32.totalorder %s137, %s138
    %p150 = scmp.eq.s32.totalorder %s18, 1
    %p151 = por %p149, %p150
    %p153 = scmp.ne.s32.totalorder %s138, %s152
    %p154 = scmp.eq.s32.totalorder %s18, 0
    %p155 = por %p153, %p154
    %s156 = ssub.s32 %s12, %s19
    %p157 = scmp.eq.s32.totalorder %s156, 0
    %s159 = sadd.s32 %s158, 1
    %s160 = scalar_select %p157, %s158, %s159
    %p163 = pneg %p157
    %p164 = scmp.eq.s32.totalorder %s12, 1
    %p165 = por %p163, %p164
    %p166 = scmp.ne.s32.totalorder %s158, %s161
    %p167 = scmp.eq.s32.totalorder %s12, 0
    %p168 = por %p166, %p167
    %p169 = scmp.ne.s32.totalorder %s158, %s161
    %p170 = scmp.eq.s32.totalorder %s17, 1
    %p171 = por %p169, %p170
    %p172 = scmp.ne.s32.totalorder %s161, %s162
    %p173 = scmp.eq.s32.totalorder %s17, 0
    %p174 = por %p172, %p173
    %p175 = scmp.ne.s32.totalorder %s161, %s162
    %p176 = scmp.eq.s32.totalorder %s18, 1
    %p177 = por %p175, %p176
    %p179 = scmp.ne.s32.totalorder %s162, %s178
    %p180 = scmp.eq.s32.totalorder %s18, 0
    %p181 = por %p179, %p180
    %p182 = scmp.le.s32.totalorder 1, %s12
    %p183 = scmp.lt.s32.totalorder %s12, 3
    %p184 = pnand %p182, %p183
    %p185 = pneg %p184
    // Predicated region
    $region9: #{conv_decoder_forward.4} parent=5 // pred_check
      _
    $region10: #{conv_decoder_forward.4} parent=5 // pred_check_branch
      %187 = sbr.rel (%p184) target = $region12
    $region11: #{conv_decoder_forward.4} parent=5 // pred_region
      %s188 = ssub.s32 %s12, 1
      // Predicated region
      $region13: #{conv_decoder_forward.4} parent=11 // pred_check
        %p189 = pneg %p85
      $region14: #{conv_decoder_forward.4} parent=11 // pred_check_branch
        %191 = sbr.rel (%p189) target = $region16
      $region15: #{conv_decoder_forward.4} parent=11 // pred_region
        _
      $region16: #{conv_decoder_forward.4} parent=11 // pred_fallthru
        _
      // Predicated region
      $region17: #{conv_decoder_forward.4} parent=11 // pred_check
        %p192 = pneg %p106
      $region18: #{conv_decoder_forward.4} parent=11 // pred_check_branch
        %194 = sbr.rel (%p192) target = $region20
      $region19: #{conv_decoder_forward.4} parent=11 // pred_region
        _
      $region20: #{conv_decoder_forward.4} parent=11 // pred_fallthru
        _
      // Predicated region
      $region21: #{conv_decoder_forward.4} parent=11 // pred_check
        %p195 = pneg %p127
      $region22: #{conv_decoder_forward.4} parent=11 // pred_check_branch
        %197 = sbr.rel (%p195) target = $region24
      $region23: #{conv_decoder_forward.4} parent=11 // pred_region
        _
      $region24: #{conv_decoder_forward.4} parent=11 // pred_fallthru
        _
      // Predicated region
      $region25: #{conv_decoder_forward.4} parent=11 // pred_check
        %p198 = pneg %p148
      $region26: #{conv_decoder_forward.4} parent=11 // pred_check_branch
        %200 = sbr.rel (%p198) target = $region28
      $region27: #{conv_decoder_forward.4} parent=11 // pred_region
        _
      $region28: #{conv_decoder_forward.4} parent=11 // pred_fallthru
        _
    $region12: #{conv_decoder_forward.4} parent=5 // pred_fallthru
      _
    %p201 = scmp.lt.s32.totalorder %s12, 2
    // Predicated region
    $region29: #{conv_decoder_forward.4} parent=5 // pred_check
      %p202 = pneg %p201
    $region30: #{conv_decoder_forward.4} parent=5 // pred_check_branch
      %204 = sbr.rel (%p202) target = $region32
    $region31: #{conv_decoder_forward.4} parent=5 // pred_region
      // Predicated region
      $region33: #{conv_decoder_forward.4} parent=31 // pred_check
        %p205 = pneg %p32
      $region34: #{conv_decoder_forward.4} parent=31 // pred_check_branch
        %207 = sbr.rel (%p205) target = $region36
      $region35: #{conv_decoder_forward.4} parent=31 // pred_region
        %p208 = scmp.lt.s32.totalorder %s12, 1
        %s209 = scalar_select %p208, %s12, 1
        %s210 = smul.addr %s209, 2
        %s211 = smul.addr %s210, 8
        %s212 = scalar_lea.vmem %s0, %s211
      $region36: #{conv_decoder_forward.4} parent=31 // pred_fallthru
        _
      // Predicated region
      $region37: #{conv_decoder_forward.4} parent=31 // pred_check
        %p213 = pneg %p58
      $region38: #{conv_decoder_forward.4} parent=31 // pred_check_branch
        %215 = sbr.rel (%p213) target = $region40
      $region39: #{conv_decoder_forward.4} parent=31 // pred_region
        %p216 = scmp.lt.s32.totalorder %s12, 1
        %s217 = scalar_select %p216, %s12, 1
        %s218 = smul.addr %s217, 3
        %s219 = smul.addr %s218, 8
        %s220 = scalar_lea.vmem %s1, %s219
      $region40: #{conv_decoder_forward.4} parent=31 // pred_fallthru
        _
    $region32: #{conv_decoder_forward.4} parent=5 // pred_fallthru
      _
    %p221 = scmp.le.s32.totalorder 1, %s12
    %p222 = scmp.lt.s32.totalorder %s12, 3
    %p223 = pnand %p221, %p222
    %p224 = pneg %p223
    // Predicated region
    $region41: #{conv_decoder_forward.4} parent=5 // pred_check
      _
    $region42: #{conv_decoder_forward.4} parent=5 // pred_check_branch
      %226 = sbr.rel (%p223) target = $region44
    $region43: #{conv_decoder_forward.4} parent=5 // pred_region
      %s227 = ssub.s32 %s12, 1
      %p228 = scmp.lt.s32.totalorder %s17, 1
      %s229 = scalar_select %p228, %s17, 1
      %s230 = smul.addr %s229, 2
      %s231 = smul.addr %s230, 8
      %s232 = scalar_lea.vmem %s0, %s231
      %p233 = pneg %p38
      %p234 = pneg %p35
      %p235 = scmp.lt.s32.totalorder %s17, 1
      %s236 = scalar_select %p235, %s17, 1
      %s237 = smul.addr %s236, 3
      %s238 = smul.addr %s237, 8
      %s239 = scalar_lea.vmem %s1, %s238
      %p240 = pneg %p64
      %p241 = pneg %p61
      %p242 = pneg %p85
      %p243 = pneg %p82
      %p244 = pneg %p106
      %p245 = pneg %p103
      %p246 = pneg %p127
      %p247 = pneg %p124
      %p248 = pneg %p148
      %p249 = pneg %p145
      %p250 = pneg %p174
      %p251 = pneg %p171
      %p252 = scmp.lt.s32.totalorder %s17, 1
      %s253 = scalar_select %p252, %s17, 1
      %s254 = smul.addr %s253, 3
      %s255 = smul.addr %s254, 8
      %s256 = scalar_lea.vmem %s6, %s255
      %p257 = scmp.lt.s32.totalorder %s17, 1
      %s258 = scalar_select %p257, %s17, 1
      %s259 = smul.addr %s258, 2
      %s260 = smul.addr %s259, 8
      %s261 = scalar_lea.vmem %s0, %s260
      %p262 = scmp.lt.s32.totalorder %s17, 1
      %s263 = scalar_select %p262, %s17, 1
      %s264 = smul.addr %s263, 3
      %s265 = smul.addr %s264, 8
      %s266 = scalar_lea.vmem %s1, %s265
      %p267 = scmp.lt.s32.totalorder %s17, 1
      %s268 = scalar_select %p267, %s17, 1
      %s269 = smul.addr %s268, 3
      %s270 = smul.addr %s269, 8
      %s271 = scalar_lea.vmem %s6, %s270
      %vm272 = vcmask 850944
      %273 = vst.msk [vmem:[#allocation2] sm:$0xff] %vm272, 0.0
      %274 = vst.msk [vmem:[#allocation2 + $0x8] sm:$0xff] %vm272, 0.0
      %vm275 = vcmask 845824
      %276 = vst.msk [vmem:[#allocation2 + $0x10] sm:$0x7] %vm275, 0.0
      %v277 = vld [vmem:[%s261] sm:$0xff]
      %v278 = vld [vmem:[%s261 + $0x8] sm:$0xff]
      %281 = vrot.lane.b32.xlu0 %v277, 20
      %v282 = vpop.permute.xlu0 %281
      %283 = vrot.lane.b32.xlu0 %v278, 20
      %v284 = vpop.permute.xlu0 %283
      %vm287 = vcmask 687264
      %288 = vst.msk [vmem:[#allocation2 + $0x1] sm:$0xff] %vm287, %v282
      %289 = vst.msk [vmem:[#allocation2 + $0x9] sm:$0xff] %vm287, %v284
      %v290 = vld [vmem:[#allocation2] sm:$0xff]
      %v291 = vld [vmem:[#allocation2 + $0x8] sm:$0xff]
      %v292 = vld [vmem:[#allocation2 + $0x10] sm:$0x1]
      %v293 = vld [vmem:[%s2] sm:$0xff]
      %v294 = vld [vmem:[%s2 + $0x8] sm:$0xff]
      %v295 = vld [vmem:[%s2 + $0x10] sm:$0xff]
      %v296 = vld [vmem:[%s2 + $0x18] sm:$0xff]
      %v297 = vld [vmem:[%s2 + $0x20] sm:$0xff]
      %v298 = vld [vmem:[%s2 + $0x28] sm:$0xff]
      %v299 = vld [vmem:[%s2 + $0x30] sm:$0xff]
      %v300 = vld [vmem:[%s2 + $0x38] sm:$0xff]
      %v301 = vld [vmem:[%s2 + $0x40] sm:$0xff]
      %v302 = vld [vmem:[%s2 + $0x48] sm:$0xff]
      %v303 = vld [vmem:[%s2 + $0x50] sm:$0xff]
      %v304 = vld [vmem:[%s2 + $0x58] sm:$0xff]
      %v305 = vld [vmem:[%s2 + $0x60] sm:$0xff]
      %v306 = vld [vmem:[#allocation2 + $0x1] sm:$0xff]
      %v307 = vld [vmem:[#allocation2 + $0x9] sm:$0xff]
      %v308 = vld [vmem:[#allocation2 + $0x11] sm:$0x1]
      %s309 = scalar_lea.vmem %s2, 104
      %v310 = vld [vmem:[%s309] sm:$0xff]
      %v311 = vld [vmem:[%s309 + $0x8] sm:$0xff]
      %v312 = vld [vmem:[%s309 + $0x10] sm:$0xff]
      %v313 = vld [vmem:[%s309 + $0x18] sm:$0xff]
      %v314 = vld [vmem:[%s309 + $0x20] sm:$0xff]
      %v315 = vld [vmem:[%s309 + $0x28] sm:$0xff]
      %v316 = vld [vmem:[%s309 + $0x30] sm:$0xff]
      %v317 = vld [vmem:[%s309 + $0x38] sm:$0xff]
      %v318 = vld [vmem:[%s309 + $0x40] sm:$0xff]
      %v319 = vld [vmem:[%s309 + $0x48] sm:$0xff]
      %v320 = vld [vmem:[%s309 + $0x50] sm:$0xff]
      %v321 = vld [vmem:[%s309 + $0x58] sm:$0xff]
      %v322 = vld [vmem:[%s309 + $0x60] sm:$0xff]
      %v324 = vsel %vm272, %v306, 0
      %v327 = vsel %vm272, %v307, 0
      %v330 = vsel %vm272, %v308, 0
      %332 = vmatprep.subr.mxu0 0.0
      %333 = vmatpush1.msra.mxu0 0.0
      %334 = vmatprep.subr.mxu0 0.0
      %335 = vmatpush1.msra.mxu0 0.0
      %336 = vmatprep.subr.mxu0 0.0
      %337 = vmatpush1.msra.mxu0 0.0
      %338 = vmatprep.subr.mxu0 0.0
      %339 = vmatpush1.msra.mxu0 %v322
      %340 = vmatprep.subr.mxu0 0.0
      %341 = vmatpush1.msra.mxu0 %v321
      %342 = vmatprep.subr.mxu0 0.0
      %343 = vmatpush1.msra.mxu0 %v320
      %344 = vmatprep.subr.mxu0 0.0
      %345 = vmatpush1.msra.mxu0 %v319
      %346 = vmatprep.subr.mxu0 0.0
      %347 = vmatpush1.msra.mxu0 %v318
      %348 = vmatprep.subr.mxu0 0.0
      %349 = vmatpush1.msra.mxu0 %v317
      %350 = vmatprep.subr.mxu0 0.0
      %351 = vmatpush1.msra.mxu0 %v316
      %352 = vmatprep.subr.mxu0 0.0
      %353 = vmatpush1.msra.mxu0 %v315
      %354 = vmatprep.subr.mxu0 0.0
      %355 = vmatpush1.msra.mxu0 %v314
      %356 = vmatprep.subr.mxu0 0.0
      %357 = vmatpush1.msra.mxu0 %v313
      %358 = vmatprep.subr.mxu0 0.0
      %359 = vmatpush1.msra.mxu0 %v312
      %360 = vmatprep.subr.mxu0 0.0
      %361 = vmatpush1.msra.mxu0 %v311
      %362 = vmatprep.subr.mxu0 0.0
      %363 = vmatpush1.msra.mxu0 %v310
      %364 = vmatprep.subr.mxu0 0.0
      %365 = vmatpush2.msra.mxu0 0.0
      %366 = vmatprep.subr.mxu0 0.0
      %367 = vmatpush2.msra.mxu0 0.0
      %368 = vmatprep.subr.mxu0 0.0
      %369 = vmatpush2.msra.mxu0 0.0
      %370 = vmatprep.subr.mxu0 0.0
      %371 = vmatpush2.msra.mxu0 0.0
      %372 = vmatprep.subr.mxu0 0.0
      %373 = vmatpush2.msra.mxu0 0.0
      %374 = vmatprep.subr.mxu0 0.0
      %375 = vmatpush2.msra.mxu0 0.0
      %376 = vmatprep.subr.mxu0 0.0
      %377 = vmatpush2.msra.mxu0 0.0
      %378 = vmatprep.subr.mxu0 0.0
      %379 = vmatpush2.msra.mxu0 0.0
      %380 = vmatprep.subr.mxu0 0.0
      %381 = vmatpush2.msra.mxu0 0.0
      %382 = vmatprep.subr.mxu0 0.0
      %383 = vmatpush2.msra.mxu0 0.0
      %384 = vmatprep.subr.mxu0 0.0
      %385 = vmatpush2.msra.mxu0 0.0
      %386 = vmatprep.subr.mxu0 0.0
      %387 = vmatpush2.msra.mxu0 0.0
      %388 = vmatprep.subr.mxu0 0.0
      %389 = vmatpush2.msra.mxu0 0.0
      %390 = vmatprep.subr.mxu0 0.0
      %391 = vmatpush2.msra.mxu0 0.0
      %392 = vmatprep.subr.mxu0 0.0
      %393 = vmatpush2.msra.mxu0 0.0
      %394 = vmatprep.subr.mxu0 0.0
      %395 = vmatpush2.msra.mxu0 0.0
      %396 = vmatprep.mubr.f32.mxu0 0.0
      %397 = vmatmul.mubr.f32.gmra.mxu0 %v324
      %v398 = vpop.f32.mrf.mxu0
      %v399 = vadd.f32 0.0, %v398
      %v400 = vpop.f32.mrf.mxu0
      %401 = vmatprep.mubr.f32.mxu0 0.0
      %402 = vmatmul.mubr.f32.gmra.mxu0 %v327
      %v403 = vpop.f32.mrf.mxu0
      %v404 = vadd.f32 0.0, %v403
      %v405 = vpop.f32.mrf.mxu0
      %406 = vmatprep.mubr.f32.mxu0 0.0
      %407 = vmatmul.mubr.f32.gmra.mxu0 %v330
      %v408 = vpop.f32.mrf.mxu0
      %v409 = vadd.f32 0.0, %v408
      %v410 = vpop.f32.mrf.mxu0
      %411 = vdwg.mxu0
      %v413 = vsel %vm272, %v290, 0
      %v416 = vsel %vm272, %v291, 0
      %v419 = vsel %vm272, %v292, 0
      %421 = vmatprep.subr.mxu0 0.0
      %422 = vmatpush1.msra.mxu0 0.0
      %423 = vmatprep.subr.mxu0 0.0
      %424 = vmatpush1.msra.mxu0 0.0
      %425 = vmatprep.subr.mxu0 0.0
      %426 = vmatpush1.msra.mxu0 0.0
      %427 = vmatprep.subr.mxu0 0.0
      %428 = vmatpush1.msra.mxu0 %v305
      %429 = vmatprep.subr.mxu0 0.0
      %430 = vmatpush1.msra.mxu0 %v304
      %431 = vmatprep.subr.mxu0 0.0
      %432 = vmatpush1.msra.mxu0 %v303
      %433 = vmatprep.subr.mxu0 0.0
      %434 = vmatpush1.msra.mxu0 %v302
      %435 = vmatprep.subr.mxu0 0.0
      %436 = vmatpush1.msra.mxu0 %v301
      %437 = vmatprep.subr.mxu0 0.0
      %438 = vmatpush1.msra.mxu0 %v300
      %439 = vmatprep.subr.mxu0 0.0
      %440 = vmatpush1.msra.mxu0 %v299
      %441 = vmatprep.subr.mxu0 0.0
      %442 = vmatpush1.msra.mxu0 %v298
      %443 = vmatprep.subr.mxu0 0.0
      %444 = vmatpush1.msra.mxu0 %v297
      %445 = vmatprep.subr.mxu0 0.0
      %446 = vmatpush1.msra.mxu0 %v296
      %447 = vmatprep.subr.mxu0 0.0
      %448 = vmatpush1.msra.mxu0 %v295
      %449 = vmatprep.subr.mxu0 0.0
      %450 = vmatpush1.msra.mxu0 %v294
      %451 = vmatprep.subr.mxu0 0.0
      %452 = vmatpush1.msra.mxu0 %v293
      %453 = vmatprep.subr.mxu0 0.0
      %454 = vmatpush2.msra.mxu0 0.0
      %455 = vmatprep.subr.mxu0 0.0
      %456 = vmatpush2.msra.mxu0 0.0
      %457 = vmatprep.subr.mxu0 0.0
      %458 = vmatpush2.msra.mxu0 0.0
      %459 = vmatprep.subr.mxu0 0.0
      %460 = vmatpush2.msra.mxu0 0.0
      %461 = vmatprep.subr.mxu0 0.0
      %462 = vmatpush2.msra.mxu0 0.0
      %463 = vmatprep.subr.mxu0 0.0
      %464 = vmatpush2.msra.mxu0 0.0
      %465 = vmatprep.subr.mxu0 0.0
      %466 = vmatpush2.msra.mxu0 0.0
      %467 = vmatprep.subr.mxu0 0.0
      %468 = vmatpush2.msra.mxu0 0.0
      %469 = vmatprep.subr.mxu0 0.0
      %470 = vmatpush2.msra.mxu0 0.0
      %471 = vmatprep.subr.mxu0 0.0
      %472 = vmatpush2.msra.mxu0 0.0
      %473 = vmatprep.subr.mxu0 0.0
      %474 = vmatpush2.msra.mxu0 0.0
      %475 = vmatprep.subr.mxu0 0.0
      %476 = vmatpush2.msra.mxu0 0.0
      %477 = vmatprep.subr.mxu0 0.0
      %478 = vmatpush2.msra.mxu0 0.0
      %479 = vmatprep.subr.mxu0 0.0
      %480 = vmatpush2.msra.mxu0 0.0
      %481 = vmatprep.subr.mxu0 0.0
      %482 = vmatpush2.msra.mxu0 0.0
      %483 = vmatprep.subr.mxu0 0.0
      %484 = vmatpush2.msra.mxu0 0.0
      %485 = vmatprep.mubr.f32.mxu0 0.0
      %486 = vmatmul.mubr.f32.gmra.mxu0 %v413
      %v487 = vpop.f32.mrf.mxu0
      %v488 = vadd.f32 %v399, %v487
      %v489 = vpop.f32.mrf.mxu0
      %490 = vmatprep.mubr.f32.mxu0 0.0
      %491 = vmatmul.mubr.f32.gmra.mxu0 %v416
      %v492 = vpop.f32.mrf.mxu0
      %v493 = vadd.f32 %v404, %v492
      %v494 = vpop.f32.mrf.mxu0
      %495 = vmatprep.mubr.f32.mxu0 0.0
      %496 = vmatmul.mubr.f32.gmra.mxu0 %v419
      %v497 = vpop.f32.mrf.mxu0
      %v498 = vadd.f32 %v409, %v497
      %v499 = vpop.f32.mrf.mxu0
      %500 = vdwg.mxu0
      %v501 = vld [vmem:[#allocation2 + $0x2] sm:$0xff]
      %v502 = vld [vmem:[#allocation2 + $0xa] sm:$0xff]
      %v503 = vld [vmem:[#allocation2 + $0x12] sm:$0x1]
      %s504 = scalar_lea.vmem %s2, 208
      %v505 = vld [vmem:[%s504] sm:$0xff]
      %v506 = vld [vmem:[%s504 + $0x8] sm:$0xff]
      %v507 = vld [vmem:[%s504 + $0x10] sm:$0xff]
      %v508 = vld [vmem:[%s504 + $0x18] sm:$0xff]
      %v509 = vld [vmem:[%s504 + $0x20] sm:$0xff]
      %v510 = vld [vmem:[%s504 + $0x28] sm:$0xff]
      %v511 = vld [vmem:[%s504 + $0x30] sm:$0xff]
      %v512 = vld [vmem:[%s504 + $0x38] sm:$0xff]
      %v513 = vld [vmem:[%s504 + $0x40] sm:$0xff]
      %v514 = vld [vmem:[%s504 + $0x48] sm:$0xff]
      %v515 = vld [vmem:[%s504 + $0x50] sm:$0xff]
      %v516 = vld [vmem:[%s504 + $0x58] sm:$0xff]
      %v517 = vld [vmem:[%s504 + $0x60] sm:$0xff]
      %v519 = vsel %vm272, %v501, 0
      %v522 = vsel %vm272, %v502, 0
      %v525 = vsel %vm272, %v503, 0
      %527 = vmatprep.subr.mxu0 0.0
      %528 = vmatpush1.msra.mxu0 0.0
      %529 = vmatprep.subr.mxu0 0.0
      %530 = vmatpush1.msra.mxu0 0.0
      %531 = vmatprep.subr.mxu0 0.0
      %532 = vmatpush1.msra.mxu0 0.0
      %533 = vmatprep.subr.mxu0 0.0
      %534 = vmatpush1.msra.mxu0 %v517
      %535 = vmatprep.subr.mxu0 0.0
      %536 = vmatpush1.msra.mxu0 %v516
      %537 = vmatprep.subr.mxu0 0.0
      %538 = vmatpush1.msra.mxu0 %v515
      %539 = vmatprep.subr.mxu0 0.0
      %540 = vmatpush1.msra.mxu0 %v514
      %541 = vmatprep.subr.mxu0 0.0
      %542 = vmatpush1.msra.mxu0 %v513
      %543 = vmatprep.subr.mxu0 0.0
      %544 = vmatpush1.msra.mxu0 %v512
      %545 = vmatprep.subr.mxu0 0.0
      %546 = vmatpush1.msra.mxu0 %v511
      %547 = vmatprep.subr.mxu0 0.0
      %548 = vmatpush1.msra.mxu0 %v510
      %549 = vmatprep.subr.mxu0 0.0
      %550 = vmatpush1.msra.mxu0 %v509
      %551 = vmatprep.subr.mxu0 0.0
      %552 = vmatpush1.msra.mxu0 %v508
      %553 = vmatprep.subr.mxu0 0.0
      %554 = vmatpush1.msra.mxu0 %v507
      %555 = vmatprep.subr.mxu0 0.0
      %556 = vmatpush1.msra.mxu0 %v506
      %557 = vmatprep.subr.mxu0 0.0
      %558 = vmatpush1.msra.mxu0 %v505
      %559 = vmatprep.subr.mxu0 0.0
      %560 = vmatpush2.msra.mxu0 0.0
      %561 = vmatprep.subr.mxu0 0.0
      %562 = vmatpush2.msra.mxu0 0.0
      %563 = vmatprep.subr.mxu0 0.0
      %564 = vmatpush2.msra.mxu0 0.0
      %565 = vmatprep.subr.mxu0 0.0
      %566 = vmatpush2.msra.mxu0 0.0
      %567 = vmatprep.subr.mxu0 0.0
      %568 = vmatpush2.msra.mxu0 0.0
      %569 = vmatprep.subr.mxu0 0.0
      %570 = vmatpush2.msra.mxu0 0.0
      %571 = vmatprep.subr.mxu0 0.0
      %572 = vmatpush2.msra.mxu0 0.0
      %573 = vmatprep.subr.mxu0 0.0
      %574 = vmatpush2.msra.mxu0 0.0
      %575 = vmatprep.subr.mxu0 0.0
      %576 = vmatpush2.msra.mxu0 0.0
      %577 = vmatprep.subr.mxu0 0.0
      %578 = vmatpush2.msra.mxu0 0.0
      %579 = vmatprep.subr.mxu0 0.0
      %580 = vmatpush2.msra.mxu0 0.0
      %581 = vmatprep.subr.mxu0 0.0
      %582 = vmatpush2.msra.mxu0 0.0
      %583 = vmatprep.subr.mxu0 0.0
      %584 = vmatpush2.msra.mxu0 0.0
      %585 = vmatprep.subr.mxu0 0.0
      %586 = vmatpush2.msra.mxu0 0.0
      %587 = vmatprep.subr.mxu0 0.0
      %588 = vmatpush2.msra.mxu0 0.0
      %589 = vmatprep.subr.mxu0 0.0
      %590 = vmatpush2.msra.mxu0 0.0
      %591 = vmatprep.mubr.f32.mxu0 0.0
      %592 = vmatmul.mubr.f32.gmra.mxu0 %v519
      %v593 = vpop.f32.mrf.mxu0
      %v594 = vadd.f32 0.0, %v593
      %v595 = vpop.f32.mrf.mxu0
      %596 = vmatprep.mubr.f32.mxu0 0.0
      %597 = vmatmul.mubr.f32.gmra.mxu0 %v522
      %v598 = vpop.f32.mrf.mxu0
      %v599 = vadd.f32 0.0, %v598
      %v600 = vpop.f32.mrf.mxu0
      %601 = vmatprep.mubr.f32.mxu0 0.0
      %602 = vmatmul.mubr.f32.gmra.mxu0 %v525
      %v603 = vpop.f32.mrf.mxu0
      %v604 = vadd.f32 0.0, %v603
      %v605 = vpop.f32.mrf.mxu0
      %606 = vdwg.mxu0
      %v607 = vadd.f32 %v488, %v594
      %v608 = vadd.f32 %v493, %v599
      %v609 = vadd.f32 %v498, %v604
      %610 = vst.msk [vmem:[#allocation3] sm:$0xff] %vm272, 0.0
      %611 = vst.msk [vmem:[#allocation3 + $0x8] sm:$0xff] %vm272, 0.0
      %612 = vst.msk [vmem:[#allocation3 + $0x10] sm:$0x7] %vm275, 0.0
      %v613 = vld [vmem:[%s266] sm:$0xff]
      %v614 = vld [vmem:[%s266 + $0x8] sm:$0xff]
      %v615 = vld [vmem:[%s266 + $0x10] sm:$0x1]
      %619 = vrot.lane.b32.xlu0 %v613, 4
      %v620 = vpop.permute.xlu0 %619
      %621 = vrot.lane.b32.xlu0 %v614, 4
      %v622 = vpop.permute.xlu0 %621
      %623 = vrot.lane.b32.xlu0 %v615, 4
      %v624 = vpop.permute.xlu0 %623
      %vm628 = vcmask 818208
      %629 = vst.msk [vmem:[#allocation3 + $0x1] sm:$0xff] %vm628, %v620
      %630 = vst.msk [vmem:[#allocation3 + $0x9] sm:$0xff] %vm628, %v622
      %vm631 = vcmask 811040
      %632 = vst.msk [vmem:[#allocation3 + $0x11] sm:$0x1] %vm631, %v624
      %v633 = vld [vmem:[#allocation3] sm:$0xff]
      %v634 = vld [vmem:[#allocation3 + $0x8] sm:$0xff]
      %v635 = vld [vmem:[#allocation3 + $0x10] sm:$0x1]
      %v636 = vld [vmem:[%s3] sm:$0xff]
      %v637 = vld [vmem:[%s3 + $0x8] sm:$0xff]
      %v638 = vld [vmem:[%s3 + $0x10] sm:$0xff]
      %v639 = vld [vmem:[%s3 + $0x18] sm:$0xff]
      %v640 = vld [vmem:[%s3 + $0x20] sm:$0xff]
      %v641 = vld [vmem:[%s3 + $0x28] sm:$0xff]
      %v642 = vld [vmem:[%s3 + $0x30] sm:$0xff]
      %v643 = vld [vmem:[%s3 + $0x38] sm:$0xff]
      %v644 = vld [vmem:[%s3 + $0x40] sm:$0xff]
      %v645 = vld [vmem:[%s3 + $0x48] sm:$0xff]
      %v646 = vld [vmem:[%s3 + $0x50] sm:$0xff]
      %v647 = vld [vmem:[%s3 + $0x58] sm:$0xff]
      %v648 = vld [vmem:[%s3 + $0x60] sm:$0xff]
      %v650 = vsel %vm272, %v633, 0
      %v653 = vsel %vm272, %v634, 0
      %v656 = vsel %vm272, %v635, 0
      %658 = vmatprep.subr.mxu0 0.0
      %659 = vmatpush1.msra.mxu0 0.0
      %660 = vmatprep.subr.mxu0 0.0
      %661 = vmatpush1.msra.mxu0 0.0
      %662 = vmatprep.subr.mxu0 0.0
      %663 = vmatpush1.msra.mxu0 0.0
      %664 = vmatprep.subr.mxu0 0.0
      %665 = vmatpush1.msra.mxu0 %v648
      %666 = vmatprep.subr.mxu0 0.0
      %667 = vmatpush1.msra.mxu0 %v647
      %668 = vmatprep.subr.mxu0 0.0
      %669 = vmatpush1.msra.mxu0 %v646
      %670 = vmatprep.subr.mxu0 0.0
      %671 = vmatpush1.msra.mxu0 %v645
      %672 = vmatprep.subr.mxu0 0.0
      %673 = vmatpush1.msra.mxu0 %v644
      %674 = vmatprep.subr.mxu0 0.0
      %675 = vmatpush1.msra.mxu0 %v643
      %676 = vmatprep.subr.mxu0 0.0
      %677 = vmatpush1.msra.mxu0 %v642
      %678 = vmatprep.subr.mxu0 0.0
      %679 = vmatpush1.msra.mxu0 %v641
      %680 = vmatprep.subr.mxu0 0.0
      %681 = vmatpush1.msra.mxu0 %v640
      %682 = vmatprep.subr.mxu0 0.0
      %683 = vmatpush1.msra.mxu0 %v639
      %684 = vmatprep.subr.mxu0 0.0
      %685 = vmatpush1.msra.mxu0 %v638
      %686 = vmatprep.subr.mxu0 0.0
      %687 = vmatpush1.msra.mxu0 %v637
      %688 = vmatprep.subr.mxu0 0.0
      %689 = vmatpush1.msra.mxu0 %v636
      %690 = vmatprep.subr.mxu0 0.0
      %691 = vmatpush2.msra.mxu0 0.0
      %692 = vmatprep.subr.mxu0 0.0
      %693 = vmatpush2.msra.mxu0 0.0
      %694 = vmatprep.subr.mxu0 0.0
      %695 = vmatpush2.msra.mxu0 0.0
      %696 = vmatprep.subr.mxu0 0.0
      %697 = vmatpush2.msra.mxu0 0.0
      %698 = vmatprep.subr.mxu0 0.0
      %699 = vmatpush2.msra.mxu0 0.0
      %700 = vmatprep.subr.mxu0 0.0
      %701 = vmatpush2.msra.mxu0 0.0
      %702 = vmatprep.subr.mxu0 0.0
      %703 = vmatpush2.msra.mxu0 0.0
      %704 = vmatprep.subr.mxu0 0.0
      %705 = vmatpush2.msra.mxu0 0.0
      %706 = vmatprep.subr.mxu0 0.0
      %707 = vmatpush2.msra.mxu0 0.0
      %708 = vmatprep.subr.mxu0 0.0
      %709 = vmatpush2.msra.mxu0 0.0
      %710 = vmatprep.subr.mxu0 0.0
      %711 = vmatpush2.msra.mxu0 0.0
      %712 = vmatprep.subr.mxu0 0.0
      %713 = vmatpush2.msra.mxu0 0.0
      %714 = vmatprep.subr.mxu0 0.0
      %715 = vmatpush2.msra.mxu0 0.0
      %716 = vmatprep.subr.mxu0 0.0
      %717 = vmatpush2.msra.mxu0 0.0
      %718 = vmatprep.subr.mxu0 0.0
      %719 = vmatpush2.msra.mxu0 0.0
      %720 = vmatprep.subr.mxu0 0.0
      %721 = vmatpush2.msra.mxu0 0.0
      %722 = vmatprep.mubr.f32.mxu0 0.0
      %723 = vmatmul.mubr.f32.gmra.mxu0 %v650
      %v724 = vpop.f32.mrf.mxu0
      %v725 = vadd.f32 0.0, %v724
      %v726 = vpop.f32.mrf.mxu0
      %727 = vmatprep.mubr.f32.mxu0 0.0
      %728 = vmatmul.mubr.f32.gmra.mxu0 %v653
      %v729 = vpop.f32.mrf.mxu0
      %v730 = vadd.f32 0.0, %v729
      %v731 = vpop.f32.mrf.mxu0
      %732 = vmatprep.mubr.f32.mxu0 0.0
      %733 = vmatmul.mubr.f32.gmra.mxu0 %v656
      %v734 = vpop.f32.mrf.mxu0
      %v735 = vadd.f32 0.0, %v734
      %v736 = vpop.f32.mrf.mxu0
      %737 = vdwg.mxu0
      %v738 = vadd.f32 %v607, %v725
      %v739 = vadd.f32 %v608, %v730
      %v740 = vadd.f32 %v609, %v735
      %v741 = vld [vmem:[#allocation3 + $0x1] sm:$0xff]
      %v742 = vld [vmem:[#allocation3 + $0x9] sm:$0xff]
      %v743 = vld [vmem:[#allocation3 + $0x11] sm:$0x1]
      %s744 = scalar_lea.vmem %s3, 104
      %v745 = vld [vmem:[%s744] sm:$0xff]
      %v746 = vld [vmem:[%s744 + $0x8] sm:$0xff]
      %v747 = vld [vmem:[%s744 + $0x10] sm:$0xff]
      %v748 = vld [vmem:[%s744 + $0x18] sm:$0xff]
      %v749 = vld [vmem:[%s744 + $0x20] sm:$0xff]
      %v750 = vld [vmem:[%s744 + $0x28] sm:$0xff]
      %v751 = vld [vmem:[%s744 + $0x30] sm:$0xff]
      %v752 = vld [vmem:[%s744 + $0x38] sm:$0xff]
      %v753 = vld [vmem:[%s744 + $0x40] sm:$0xff]
      %v754 = vld [vmem:[%s744 + $0x48] sm:$0xff]
      %v755 = vld [vmem:[%s744 + $0x50] sm:$0xff]
      %v756 = vld [vmem:[%s744 + $0x58] sm:$0xff]
      %v757 = vld [vmem:[%s744 + $0x60] sm:$0xff]
      %v759 = vsel %vm272, %v741, 0
      %v762 = vsel %vm272, %v742, 0
      %v765 = vsel %vm272, %v743, 0
      %767 = vmatprep.subr.mxu0 0.0
      %768 = vmatpush1.msra.mxu0 0.0
      %769 = vmatprep.subr.mxu0 0.0
      %770 = vmatpush1.msra.mxu0 0.0
      %771 = vmatprep.subr.mxu0 0.0
      %772 = vmatpush1.msra.mxu0 0.0
      %773 = vmatprep.subr.mxu0 0.0
      %774 = vmatpush1.msra.mxu0 %v757
      %775 = vmatprep.subr.mxu0 0.0
      %776 = vmatpush1.msra.mxu0 %v756
      %777 = vmatprep.subr.mxu0 0.0
      %778 = vmatpush1.msra.mxu0 %v755
      %779 = vmatprep.subr.mxu0 0.0
      %780 = vmatpush1.msra.mxu0 %v754
      %781 = vmatprep.subr.mxu0 0.0
      %782 = vmatpush1.msra.mxu0 %v753
      %783 = vmatprep.subr.mxu0 0.0
      %784 = vmatpush1.msra.mxu0 %v752
      %785 = vmatprep.subr.mxu0 0.0
      %786 = vmatpush1.msra.mxu0 %v751
      %787 = vmatprep.subr.mxu0 0.0
      %788 = vmatpush1.msra.mxu0 %v750
      %789 = vmatprep.subr.mxu0 0.0
      %790 = vmatpush1.msra.mxu0 %v749
      %791 = vmatprep.subr.mxu0 0.0
      %792 = vmatpush1.msra.mxu0 %v748
      %793 = vmatprep.subr.mxu0 0.0
      %794 = vmatpush1.msra.mxu0 %v747
      %795 = vmatprep.subr.mxu0 0.0
      %796 = vmatpush1.msra.mxu0 %v746
      %797 = vmatprep.subr.mxu0 0.0
      %798 = vmatpush1.msra.mxu0 %v745
      %799 = vmatprep.subr.mxu0 0.0
      %800 = vmatpush2.msra.mxu0 0.0
      %801 = vmatprep.subr.mxu0 0.0
      %802 = vmatpush2.msra.mxu0 0.0
      %803 = vmatprep.subr.mxu0 0.0
      %804 = vmatpush2.msra.mxu0 0.0
      %805 = vmatprep.subr.mxu0 0.0
      %806 = vmatpush2.msra.mxu0 0.0
      %807 = vmatprep.subr.mxu0 0.0
      %808 = vmatpush2.msra.mxu0 0.0
      %809 = vmatprep.subr.mxu0 0.0
      %810 = vmatpush2.msra.mxu0 0.0
      %811 = vmatprep.subr.mxu0 0.0
      %812 = vmatpush2.msra.mxu0 0.0
      %813 = vmatprep.subr.mxu0 0.0
      %814 = vmatpush2.msra.mxu0 0.0
      %815 = vmatprep.subr.mxu0 0.0
      %816 = vmatpush2.msra.mxu0 0.0
      %817 = vmatprep.subr.mxu0 0.0
      %818 = vmatpush2.msra.mxu0 0.0
      %819 = vmatprep.subr.mxu0 0.0
      %820 = vmatpush2.msra.mxu0 0.0
      %821 = vmatprep.subr.mxu0 0.0
      %822 = vmatpush2.msra.mxu0 0.0
      %823 = vmatprep.subr.mxu0 0.0
      %824 = vmatpush2.msra.mxu0 0.0
      %825 = vmatprep.subr.mxu0 0.0
      %826 = vmatpush2.msra.mxu0 0.0
      %827 = vmatprep.subr.mxu0 0.0
      %828 = vmatpush2.msra.mxu0 0.0
      %829 = vmatprep.subr.mxu0 0.0
      %830 = vmatpush2.msra.mxu0 0.0
      %831 = vmatprep.mubr.f32.mxu0 0.0
      %832 = vmatmul.mubr.f32.gmra.mxu0 %v759
      %v833 = vpop.f32.mrf.mxu0
      %v834 = vadd.f32 0.0, %v833
      %v835 = vpop.f32.mrf.mxu0
      %836 = vmatprep.mubr.f32.mxu0 0.0
      %837 = vmatmul.mubr.f32.gmra.mxu0 %v762
      %v838 = vpop.f32.mrf.mxu0
      %v839 = vadd.f32 0.0, %v838
      %v840 = vpop.f32.mrf.mxu0
      %841 = vmatprep.mubr.f32.mxu0 0.0
      %842 = vmatmul.mubr.f32.gmra.mxu0 %v765
      %v843 = vpop.f32.mrf.mxu0
      %v844 = vadd.f32 0.0, %v843
      %v845 = vpop.f32.mrf.mxu0
      %846 = vdwg.mxu0
      %v847 = vadd.f32 %v738, %v834
      %v848 = vadd.f32 %v739, %v839
      %v849 = vadd.f32 %v740, %v844
      %v850 = vld [vmem:[#allocation3 + $0x2] sm:$0xff]
      %v851 = vld [vmem:[#allocation3 + $0xa] sm:$0xff]
      %v852 = vld [vmem:[#allocation3 + $0x12] sm:$0x1]
      %s853 = scalar_lea.vmem %s3, 208
      %v854 = vld [vmem:[%s853] sm:$0xff]
      %v855 = vld [vmem:[%s853 + $0x8] sm:$0xff]
      %v856 = vld [vmem:[%s853 + $0x10] sm:$0xff]
      %v857 = vld [vmem:[%s853 + $0x18] sm:$0xff]
      %v858 = vld [vmem:[%s853 + $0x20] sm:$0xff]
      %v859 = vld [vmem:[%s853 + $0x28] sm:$0xff]
      %v860 = vld [vmem:[%s853 + $0x30] sm:$0xff]
      %v861 = vld [vmem:[%s853 + $0x38] sm:$0xff]
      %v862 = vld [vmem:[%s853 + $0x40] sm:$0xff]
      %v863 = vld [vmem:[%s853 + $0x48] sm:$0xff]
      %v864 = vld [vmem:[%s853 + $0x50] sm:$0xff]
      %v865 = vld [vmem:[%s853 + $0x58] sm:$0xff]
      %v866 = vld [vmem:[%s853 + $0x60] sm:$0xff]
      %v868 = vsel %vm272, %v850, 0
      %v871 = vsel %vm272, %v851, 0
      %v874 = vsel %vm272, %v852, 0
      %876 = vmatprep.subr.mxu0 0.0
      %877 = vmatpush1.msra.mxu0 0.0
      %878 = vmatprep.subr.mxu0 0.0
      %879 = vmatpush1.msra.mxu0 0.0
      %880 = vmatprep.subr.mxu0 0.0
      %881 = vmatpush1.msra.mxu0 0.0
      %882 = vmatprep.subr.mxu0 0.0
      %883 = vmatpush1.msra.mxu0 %v866
      %884 = vmatprep.subr.mxu0 0.0
      %885 = vmatpush1.msra.mxu0 %v865
      %886 = vmatprep.subr.mxu0 0.0
      %887 = vmatpush1.msra.mxu0 %v864
      %888 = vmatprep.subr.mxu0 0.0
      %889 = vmatpush1.msra.mxu0 %v863
      %890 = vmatprep.subr.mxu0 0.0
      %891 = vmatpush1.msra.mxu0 %v862
      %892 = vmatprep.subr.mxu0 0.0
      %893 = vmatpush1.msra.mxu0 %v861
      %894 = vmatprep.subr.mxu0 0.0
      %895 = vmatpush1.msra.mxu0 %v860
      %896 = vmatprep.subr.mxu0 0.0
      %897 = vmatpush1.msra.mxu0 %v859
      %898 = vmatprep.subr.mxu0 0.0
      %899 = vmatpush1.msra.mxu0 %v858
      %900 = vmatprep.subr.mxu0 0.0
      %901 = vmatpush1.msra.mxu0 %v857
      %902 = vmatprep.subr.mxu0 0.0
      %903 = vmatpush1.msra.mxu0 %v856
      %904 = vmatprep.subr.mxu0 0.0
      %905 = vmatpush1.msra.mxu0 %v855
      %906 = vmatprep.subr.mxu0 0.0
      %907 = vmatpush1.msra.mxu0 %v854
      %908 = vmatprep.subr.mxu0 0.0
      %909 = vmatpush2.msra.mxu0 0.0
      %910 = vmatprep.subr.mxu0 0.0
      %911 = vmatpush2.msra.mxu0 0.0
      %912 = vmatprep.subr.mxu0 0.0
      %913 = vmatpush2.msra.mxu0 0.0
      %914 = vmatprep.subr.mxu0 0.0
      %915 = vmatpush2.msra.mxu0 0.0
      %916 = vmatprep.subr.mxu0 0.0
      %917 = vmatpush2.msra.mxu0 0.0
      %918 = vmatprep.subr.mxu0 0.0
      %919 = vmatpush2.msra.mxu0 0.0
      %920 = vmatprep.subr.mxu0 0.0
      %921 = vmatpush2.msra.mxu0 0.0
      %922 = vmatprep.subr.mxu0 0.0
      %923 = vmatpush2.msra.mxu0 0.0
      %924 = vmatprep.subr.mxu0 0.0
      %925 = vmatpush2.msra.mxu0 0.0
      %926 = vmatprep.subr.mxu0 0.0
      %927 = vmatpush2.msra.mxu0 0.0
      %928 = vmatprep.subr.mxu0 0.0
      %929 = vmatpush2.msra.mxu0 0.0
      %930 = vmatprep.subr.mxu0 0.0
      %931 = vmatpush2.msra.mxu0 0.0
      %932 = vmatprep.subr.mxu0 0.0
      %933 = vmatpush2.msra.mxu0 0.0
      %934 = vmatprep.subr.mxu0 0.0
      %935 = vmatpush2.msra.mxu0 0.0
      %936 = vmatprep.subr.mxu0 0.0
      %937 = vmatpush2.msra.mxu0 0.0
      %938 = vmatprep.subr.mxu0 0.0
      %939 = vmatpush2.msra.mxu0 0.0
      %940 = vmatprep.mubr.f32.mxu0 0.0
      %941 = vmatmul.mubr.f32.gmra.mxu0 %v868
      %v942 = vpop.f32.mrf.mxu0
      %v943 = vadd.f32 0.0, %v942
      %v944 = vpop.f32.mrf.mxu0
      %945 = vmatprep.mubr.f32.mxu0 0.0
      %946 = vmatmul.mubr.f32.gmra.mxu0 %v871
      %v947 = vpop.f32.mrf.mxu0
      %v948 = vadd.f32 0.0, %v947
      %v949 = vpop.f32.mrf.mxu0
      %950 = vmatprep.mubr.f32.mxu0 0.0
      %951 = vmatmul.mubr.f32.gmra.mxu0 %v874
      %v952 = vpop.f32.mrf.mxu0
      %v953 = vadd.f32 0.0, %v952
      %v954 = vpop.f32.mrf.mxu0
      %955 = vdwg.mxu0
      %v956 = vadd.f32 %v847, %v943
      %v957 = vadd.f32 %v848, %v948
      %v958 = vadd.f32 %v849, %v953
      %v959 = vld [vmem:[%s4] sm:$0x1]
      %v961 = vlaneseq
      %v962 = vshrl.u32 %v961, 7
      %v963 = vsub.s32 0, %v962
      %v964 = vrot.slane %v959, %v963
      %v966 = vmul.f32 %v956, %v964
      %v967 = vmul.f32 %v957, %v964
      %v968 = vmul.f32 %v958, %v964
      %v969 = vld [vmem:[%s5] sm:$0x1]
      %v971 = vlaneseq
      %v972 = vshrl.u32 %v971, 7
      %v973 = vsub.s32 0, %v972
      %v974 = vrot.slane %v969, %v973
      %v976 = vadd.f32 %v966, %v974
      %v977 = vadd.f32 %v967, %v974
      %v978 = vadd.f32 %v968, %v974
      %vm979 = vcmp.ge.f32.partialorder %v976, 0.0
      %vm980 = vcmp.ge.f32.partialorder %v977, 0.0
      %vm981 = vcmp.ge.f32.partialorder %v978, 0.0
      %v982 = vmul.f32 %v976, 0.01
      %v983 = vmul.f32 %v977, 0.01
      %v984 = vmul.f32 %v978, 0.01
      %v985 = vsel %vm979, %v976, %v982
      %v986 = vsel %vm980, %v977, %v983
      %v987 = vsel %vm981, %v978, %v984
      %vm988 = vcmask 785408
      %989 = vst.msk [vmem:[%s271] sm:$0xff] %vm988, %v985
      %990 = vst.msk [vmem:[%s271 + $0x8] sm:$0xff] %vm988, %v986
      %vm991 = vcmask 778240
      %992 = vst.msk [vmem:[%s271 + $0x10] sm:$0x1] %vm991, %v987
      %p993 = scmp.lt.s32.totalorder %s17, 1
      %s994 = scalar_select %p993, %s17, 1
      %s995 = smul.addr %s994, 3
      %s996 = smul.addr %s995, 8
      %s997 = scalar_lea.vmem %s6, %s996
      // Predicated region
      $region45: #{conv_decoder_forward.4} parent=43 // pred_check
        %p998 = pneg %p171
      $region46: #{conv_decoder_forward.4} parent=43 // pred_check_branch
        %1000 = sbr.rel (%p998) target = $region48
      $region47: #{conv_decoder_forward.4} parent=43 // pred_region
        _
      $region48: #{conv_decoder_forward.4} parent=43 // pred_fallthru
        _
    $region44: #{conv_decoder_forward.4} parent=5 // pred_fallthru
      _
    %p1001 = scmp.le.s32.totalorder 2, %s12
    // Predicated region
    $region49: #{conv_decoder_forward.4} parent=5 // pred_check
      %p1002 = pneg %p1001
    $region50: #{conv_decoder_forward.4} parent=5 // pred_check_branch
      %1004 = sbr.rel (%p1002) target = $region52
    $region51: #{conv_decoder_forward.4} parent=5 // pred_region
      %s1005 = ssub.s32 %s12, 2
      // Predicated region
      $region53: #{conv_decoder_forward.4} parent=51 // pred_check
        %p1006 = pneg %p177
      $region54: #{conv_decoder_forward.4} parent=51 // pred_check_branch
        %1008 = sbr.rel (%p1006) target = $region56
      $region55: #{conv_decoder_forward.4} parent=51 // pred_region
        %p1009 = scmp.lt.s32.totalorder %s18, 1
        %s1010 = scalar_select %p1009, %s18, 1
        %s1011 = smul.addr %s1010, 3
        %s1012 = smul.addr %s1011, 8
        %s1013 = scalar_lea.vmem %s6, %s1012
      $region56: #{conv_decoder_forward.4} parent=51 // pred_fallthru
        _
    $region52: #{conv_decoder_forward.4} parent=5 // pred_fallthru
      _
  $region6: #{conv_decoder_forward.4} parent=0 // loop_footer
    %s16 = sadd.s32 1, %s12
  $region7: #{conv_decoder_forward.4} parent=0 // loop_footer_branch
    %11 = sbr.rel target = $region3
  $region8: #{conv_decoder_forward.4} parent=0 // loop_exit
    _

</llo_original>
